<compile_context>
chip_gen: v6e
topology: v6e:2x2x1
jax: 0.10.0
libtpu: 0.0.40
codegen_flags: <defaults>
</compile_context>

<pallas_src>
import functools

import jax
import jax.numpy as jnp
from jax import lax
from jax.experimental import pallas as pl
from jax.experimental.pallas import tpu as pltpu


def _mha_kernel(q_ref, k_ref, v_ref, wqkv_ref, wot_ref, o_ref, *,
                n_heads, head_dim, compute_dtype):
    """One program per block of `block_b` batch elements.

    q_ref/k_ref/v_ref : (block_b, S, Ep) lane-dense activation blocks
    wqkv_ref          : (3, Ep, Ep)  block-diagonal, pre-transposed projection
                        weights [Wq*scale | Wk | Wv], zero-padded to Ep
    wot_ref           : (Ep, Ep)     W_o^T, zero-padded to Ep
    o_ref             : (block_b, S, Ep) output block
    """
    TB, S, Ep = q_ref.shape
    D = head_dim
    N = TB * S
    f32 = jnp.float32

    # Flatten the batch block along sublanes -> lane-dense (N, Ep) operands.
    q = q_ref[...].reshape(N, Ep).astype(compute_dtype)
    k = k_ref[...].reshape(N, Ep).astype(compute_dtype)
    v = v_ref[...].reshape(N, Ep).astype(compute_dtype)

    wqkv = wqkv_ref[...]                                    # (3, Ep, Ep)
    # Fused lane-dense projections: one (N,Ep)@(Ep,Ep) MXU matmul each, fed
    # from a single resident weight slab (1/sqrt(D) already folded into [0]).
    Q = jnp.dot(q, wqkv[0], preferred_element_type=f32).astype(compute_dtype)
    K = jnp.dot(k, wqkv[1], preferred_element_type=f32).astype(compute_dtype)
    V = jnp.dot(v, wqkv[2], preferred_element_type=f32).astype(compute_dtype)

    wot = wot_ref[...]                                      # (Ep, Ep) = W_o^T

    # Contract the last dims of both operands (Q_h . K_h^T without an explicit .T).
    dn = (((1,), (1,)), ((), ()))

    # Per (batch element, head) attention.  block_b and n_heads are small and
    # static, so these loops unroll.  NOTE: with tiny head_dim (D=8 here) each
    # score matmul contracts only D of the MXU's 128/256 columns; production
    # shapes should use D >= 128 (or batch heads into one block-structured
    # matmul) to recover MXU utilisation.
    for b in range(TB):
        r0 = b * S
        acc = jnp.zeros((S, Ep), f32)
        for h in range(n_heads):
            c0 = h * D
            Qh = Q[r0:r0 + S, c0:c0 + D]                    # (S, D)
            Kh = K[r0:r0 + S, c0:c0 + D]
            Vh = V[r0:r0 + S, c0:c0 + D]

            s = lax.dot_general(Qh, Kh, dn, preferred_element_type=f32)  # (S, S)
            # Softmax kept in f32 (v5e has no bf16 VPU/EUP).
            s = s - jnp.max(s, axis=-1, keepdims=True)
            p = jnp.exp(s)
            inv_l = pl.reciprocal(jnp.sum(p, axis=-1, keepdims=True), approx=True)
            # Fold the 1/l normalisation into the attn.V result (EUP, not VALU).
            attn_h = jnp.dot(p.astype(compute_dtype), Vh,
                             preferred_element_type=f32) * inv_l        # (S, D)
            # Head h's contribution to concat @ W_o^T.
            acc = acc + jnp.dot(attn_h.astype(compute_dtype), wot[c0:c0 + D, :],
                                preferred_element_type=f32)
        # One lane-dense (S, Ep) store per batch element — no read-modify-write.
        o_ref[b, :, :] = acc.astype(o_ref.dtype)


def multi_head_attention(key, query, value, wk, wq, wv, wo, n_heads, *,
                         block_b=None, compute_dtype=jnp.float32):
    """key/query/value: (B, S, E); wk/wq/wv: (D, D); wo: (E, E) (PyTorch (out,in) layout)."""
    B, S, E = key.shape
    assert query.shape == key.shape == value.shape
    assert E % n_heads == 0
    D = E // n_heads
    scale = 1.0 / (D ** 0.5)

    # --- batch blocking -------------------------------------------------------
    if block_b is None:
        # Keep >= 2 grid steps when possible so "parallel" batch steps can shard
        # across v7x's two TensorCores; on 1-TC chips (v5e/v6e) this is neutral.
        block_b = B if B < 2 else max(1, B // 2)
    block_b = min(block_b, B)
    while B % block_b:               # block_b must divide B
        block_b -= 1
    grid = (B // block_b,)

    # --- lane-dense padding of the embedding axis -----------------------------
    LANE = 128
    Ep = ((E + LANE - 1) // LANE) * LANE
    pad_e = Ep - E

    def pad_act(x):
        return jnp.pad(x, ((0, 0), (0, 0), (0, pad_e))) if pad_e else x

    q_in = pad_act(query)
    k_in = pad_act(key)
    v_in = pad_act(value)

    # Shared per-head (D,D) nn.Linear (PyTorch (out,in) layout) -> block-diagonal
    # (E,E) weight, pre-transposed so the kernel applies it as x @ W, then
    # zero-padded to (Ep, Ep).  The 1/sqrt(D) scale folds into the Q weights.
    def block_diag_t(w):
        m = jax.scipy.linalg.block_diag(*([w.T] * n_heads))   # (E, E)
        return jnp.pad(m, ((0, pad_e), (0, pad_e))) if pad_e else m

    wqkv = jnp.stack([block_diag_t(wq) * scale,
                      block_diag_t(wk),
                      block_diag_t(wv)]).astype(compute_dtype)   # (3, Ep, Ep)
    wo_t = wo.T                                                  # (E, E)
    if pad_e:
        wo_t = jnp.pad(wo_t, ((0, pad_e), (0, pad_e)))
    wo_t = wo_t.astype(compute_dtype)                            # (Ep, Ep)

    kernel = functools.partial(_mha_kernel, n_heads=n_heads, head_dim=D,
                               compute_dtype=compute_dtype)

    x_spec = pl.BlockSpec((block_b, S, Ep), lambda b: (b, 0, 0))

    out = pl.pallas_call(
        kernel,
        out_shape=jax.ShapeDtypeStruct((B, S, Ep), jnp.float32),
        grid_spec=pltpu.PrefetchScalarGridSpec(
            num_scalar_prefetch=0,
            grid=grid,
            in_specs=[x_spec, x_spec, x_spec,
                      pl.BlockSpec((3, Ep, Ep), lambda b: (0, 0, 0)),   # fetched once
                      pl.BlockSpec((Ep, Ep), lambda b: (0, 0))],        # fetched once
            out_specs=pl.BlockSpec((block_b, S, Ep), lambda b: (b, 0, 0)),
        ),
        compiler_params=pltpu.CompilerParams(
            dimension_semantics=("parallel",),        # batch steps shard across TCs
            vmem_limit_bytes=32 * 1024 * 1024,        # explicit budget (v7x-safe)
        ),
    )(q_in, k_in, v_in, wqkv, wo_t)

    return out[..., :E] if pad_e else out


def ref_mha(key, query, value, wk, wq, wv, wo, n_heads):
    """Pure-JAX reference mirroring the PyTorch forward exactly."""
    B, S, E = key.shape
    D = E // n_heads

    def proj(x, w):  # nn.Linear applied to per-head slices: x_h @ w.T
        xh = x.reshape(B, S, n_heads, D)
        return jnp.einsum('bshd,od->bsho', xh, w)

    K = proj(key, wk).transpose(0, 2, 1, 3)     # (B, H, S, D)
    Q = proj(query, wq).transpose(0, 2, 1, 3)
    V = proj(value, wv).transpose(0, 2, 1, 3)
    s = jnp.einsum('bhqd,bhkd->bhqk', Q, K) / (D ** 0.5)
    p = jax.nn.softmax(s, axis=-1)
    attn = jnp.einsum('bhqk,bhkd->bhqd', p, V)
    concat = attn.transpose(0, 2, 1, 3).reshape(B, S, E)
    return concat @ wo.T


if __name__ == "__main__":
    # Small shapes consistent with the module's forward.
    B, S, E, H = 4, 8, 32, 4
    D = E // H

    root = jax.random.PRNGKey(0)
    k_key, k_query, k_value, k_wk, k_wq, k_wv, k_wo = jax.random.split(root, 7)

    key_in = jax.random.normal(k_key, (B, S, E), dtype=jnp.float32)
    query_in = jax.random.normal(k_query, (B, S, E), dtype=jnp.float32)
    value_in = jax.random.normal(k_value, (B, S, E), dtype=jnp.float32)

    # PyTorch nn.Linear weight layout: (out_features, in_features), bias=False.
    wk = jax.random.normal(k_wk, (D, D), dtype=jnp.float32) * 0.1
    wq = jax.random.normal(k_wq, (D, D), dtype=jnp.float32) * 0.1
    wv = jax.random.normal(k_wv, (D, D), dtype=jnp.float32) * 0.1
    wo = jax.random.normal(k_wo, (E, E), dtype=jnp.float32) * 0.1

    ref = ref_mha(key_in, query_in, value_in, wk, wq, wv, wo, H)

    # f32 path (default).  Tolerance accounts for the approximate EUP
    # reciprocal in the softmax normalisation.
    out = multi_head_attention(key_in, query_in, value_in, wk, wq, wv, wo, H)
    out = jax.block_until_ready(out)
    assert out.shape == (B, S, E)
    assert jnp.allclose(out, ref, atol=5e-3, rtol=5e-3), \
        f"f32 max abs diff = {jnp.max(jnp.abs(out - ref))}"

    # bf16 MXU feeding (v6e/v7x fast path); accumulation stays f32, softmax f32.
    out_bf16 = multi_head_attention(key_in, query_in, value_in, wk, wq, wv, wo, H,
                                    compute_dtype=jnp.bfloat16)
    out_bf16 = jax.block_until_ready(out_bf16)
    assert jnp.allclose(out_bf16, ref, atol=5e-2, rtol=5e-2), \
        f"bf16 max abs diff = {jnp.max(jnp.abs(out_bf16 - ref))}"

    print("KERNEL_OK")
</pallas_src>

<mosaic_0001>
module attributes {stable_mosaic.version = 11 : i64} {
  func.func @_mha_kernel(%arg0: i32, %arg1: memref<2x8x128xf32, #tpu.memory_space<vmem>>, %arg2: memref<2x8x128xf32, #tpu.memory_space<vmem>>, %arg3: memref<2x8x128xf32, #tpu.memory_space<vmem>>, %arg4: memref<3x128x128xf32, #tpu.memory_space<vmem>>, %arg5: memref<128x128xf32, #tpu.memory_space<vmem>>, %arg6: memref<2x8x128xf32, #tpu.memory_space<vmem>>) attributes {dimension_semantics = [#tpu.dimension_semantics<parallel>], iteration_bounds = array<i64: 2>, scalar_prefetch = 0 : i64, scratch_operands = 0 : i64, tpu.core_type = #tpu.core_type<tc>, window_params = [{transform_indices = @transform_0, window_bounds = array<i64: 2, 8, 128>}, {transform_indices = @transform_1, window_bounds = array<i64: 2, 8, 128>}, {transform_indices = @transform_2, window_bounds = array<i64: 2, 8, 128>}, {pipeline_mode = #tpu.pipeline_mode<synchronous>, transform_indices = @transform_3, window_bounds = array<i64: 3, 128, 128>}, {pipeline_mode = #tpu.pipeline_mode<synchronous>, transform_indices = @transform_4, window_bounds = array<i64: 128, 128>}, {transform_indices = @transform_5, window_bounds = array<i64: 2, 8, 128>}]} {
    %c0 = arith.constant 0 : index
    %c0_0 = arith.constant 0 : index
    %c0_1 = arith.constant 0 : index
    %0 = vector.load %arg1[%c0, %c0_0, %c0_1] : memref<2x8x128xf32, #tpu.memory_space<vmem>>, vector<2x8x128xf32>
    %1 = vector.shape_cast %0 : vector<2x8x128xf32> to vector<16x128xf32>
    %c0_2 = arith.constant 0 : index
    %c0_3 = arith.constant 0 : index
    %c0_4 = arith.constant 0 : index
    %2 = vector.load %arg2[%c0_2, %c0_3, %c0_4] : memref<2x8x128xf32, #tpu.memory_space<vmem>>, vector<2x8x128xf32>
    %3 = vector.shape_cast %2 : vector<2x8x128xf32> to vector<16x128xf32>
    %c0_5 = arith.constant 0 : index
    %c0_6 = arith.constant 0 : index
    %c0_7 = arith.constant 0 : index
    %4 = vector.load %arg3[%c0_5, %c0_6, %c0_7] : memref<2x8x128xf32, #tpu.memory_space<vmem>>, vector<2x8x128xf32>
    %5 = vector.shape_cast %4 : vector<2x8x128xf32> to vector<16x128xf32>
    %c0_8 = arith.constant 0 : index
    %c0_9 = arith.constant 0 : index
    %c0_10 = arith.constant 0 : index
    %6 = vector.load %arg4[%c0_8, %c0_9, %c0_10] : memref<3x128x128xf32, #tpu.memory_space<vmem>>, vector<3x128x128xf32>
    %7 = vector.extract_strided_slice %6 {offsets = [0, 0, 0], sizes = [1, 128, 128], strides = [1, 1, 1]} : vector<3x128x128xf32> to vector<1x128x128xf32>
    %8 = vector.shape_cast %7 : vector<1x128x128xf32> to vector<128x128xf32>
    %cst = arith.constant dense<0.000000e+00> : vector<16x128xf32>
    %9 = tpu.matmul %1, %8, %cst {dimension_numbers = #tpu.dot_dimension_numbers<[1], [0], [0], [1], [0, 0, 1, 1], [], []>} : vector<16x128xf32>, vector<128x128xf32>, vector<16x128xf32> -> vector<16x128xf32>
    %10 = vector.extract_strided_slice %6 {offsets = [1, 0, 0], sizes = [1, 128, 128], strides = [1, 1, 1]} : vector<3x128x128xf32> to vector<1x128x128xf32>
    %11 = vector.shape_cast %10 : vector<1x128x128xf32> to vector<128x128xf32>
    %cst_11 = arith.constant dense<0.000000e+00> : vector<16x128xf32>
    %12 = tpu.matmul %3, %11, %cst_11 {dimension_numbers = #tpu.dot_dimension_numbers<[1], [0], [0], [1], [0, 0, 1, 1], [], []>} : vector<16x128xf32>, vector<128x128xf32>, vector<16x128xf32> -> vector<16x128xf32>
    %13 = vector.extract_strided_slice %6 {offsets = [2, 0, 0], sizes = [1, 128, 128], strides = [1, 1, 1]} : vector<3x128x128xf32> to vector<1x128x128xf32>
    %14 = vector.shape_cast %13 : vector<1x128x128xf32> to vector<128x128xf32>
    %cst_12 = arith.constant dense<0.000000e+00> : vector<16x128xf32>
    %15 = tpu.matmul %5, %14, %cst_12 {dimension_numbers = #tpu.dot_dimension_numbers<[1], [0], [0], [1], [0, 0, 1, 1], [], []>} : vector<16x128xf32>, vector<128x128xf32>, vector<16x128xf32> -> vector<16x128xf32>
    %c0_13 = arith.constant 0 : index
    %c0_14 = arith.constant 0 : index
    %16 = vector.load %arg5[%c0_13, %c0_14] : memref<128x128xf32, #tpu.memory_space<vmem>>, vector<128x128xf32>
    %cst_15 = arith.constant 0.000000e+00 : f32
    %17 = vector.broadcast %cst_15 : f32 to vector<8x128xf32>
    %18 = vector.extract_strided_slice %9 {offsets = [0, 0], sizes = [8, 8], strides = [1, 1]} : vector<16x128xf32> to vector<8x8xf32>
    %19 = vector.extract_strided_slice %12 {offsets = [0, 0], sizes = [8, 8], strides = [1, 1]} : vector<16x128xf32> to vector<8x8xf32>
    %20 = vector.extract_strided_slice %15 {offsets = [0, 0], sizes = [8, 8], strides = [1, 1]} : vector<16x128xf32> to vector<8x8xf32>
    %cst_16 = arith.constant dense<0.000000e+00> : vector<8x8xf32>
    %21 = tpu.matmul %18, %19, %cst_16 {dimension_numbers = #tpu.dot_dimension_numbers<[1], [1], [0], [0], [0, 0, 1, 0], [], []>} : vector<8x8xf32>, vector<8x8xf32>, vector<8x8xf32> -> vector<8x8xf32>
    %cst_17 = arith.constant dense<0xFF800000> : vector<8xf32>
    %22 = vector.multi_reduction <maximumf>, %21, %cst_17 [1] : vector<8x8xf32> to vector<8xf32>
    %23 = vector.shape_cast %22 : vector<8xf32> to vector<8x1xf32>
    %24 = vector.broadcast %23 : vector<8x1xf32> to vector<8x8xf32>
    %25 = arith.subf %21, %24 : vector<8x8xf32>
    %26 = math.exp %25 : vector<8x8xf32>
    %cst_18 = arith.constant dense<0.000000e+00> : vector<8xf32>
    %27 = vector.multi_reduction <add>, %26, %cst_18 [1] : vector<8x8xf32> to vector<8xf32>
    %28 = vector.shape_cast %27 : vector<8xf32> to vector<8x1xf32>
    %29 = tpu.reciprocal %28 {approx = true} : vector<8x1xf32> -> vector<8x1xf32>
    %cst_19 = arith.constant dense<0.000000e+00> : vector<8x8xf32>
    %30 = tpu.matmul %26, %20, %cst_19 {dimension_numbers = #tpu.dot_dimension_numbers<[1], [0], [0], [1], [0, 0, 1, 1], [], []>} : vector<8x8xf32>, vector<8x8xf32>, vector<8x8xf32> -> vector<8x8xf32>
    %31 = vector.broadcast %29 : vector<8x1xf32> to vector<8x8xf32>
    %32 = arith.mulf %30, %31 : vector<8x8xf32>
    %33 = vector.extract_strided_slice %16 {offsets = [0, 0], sizes = [8, 128], strides = [1, 1]} : vector<128x128xf32> to vector<8x128xf32>
    %cst_20 = arith.constant dense<0.000000e+00> : vector<8x128xf32>
    %34 = tpu.matmul %32, %33, %cst_20 {dimension_numbers = #tpu.dot_dimension_numbers<[1], [0], [0], [1], [0, 0, 1, 1], [], []>} : vector<8x8xf32>, vector<8x128xf32>, vector<8x128xf32> -> vector<8x128xf32>
    %35 = arith.addf %17, %34 : vector<8x128xf32>
    %36 = vector.extract_strided_slice %9 {offsets = [0, 8], sizes = [8, 8], strides = [1, 1]} : vector<16x128xf32> to vector<8x8xf32>
    %37 = vector.extract_strided_slice %12 {offsets = [0, 8], sizes = [8, 8], strides = [1, 1]} : vector<16x128xf32> to vector<8x8xf32>
    %38 = vector.extract_strided_slice %15 {offsets = [0, 8], sizes = [8, 8], strides = [1, 1]} : vector<16x128xf32> to vector<8x8xf32>
    %cst_21 = arith.constant dense<0.000000e+00> : vector<8x8xf32>
    %39 = tpu.matmul %36, %37, %cst_21 {dimension_numbers = #tpu.dot_dimension_numbers<[1], [1], [0], [0], [0, 0, 1, 0], [], []>} : vector<8x8xf32>, vector<8x8xf32>, vector<8x8xf32> -> vector<8x8xf32>
    %cst_22 = arith.constant dense<0xFF800000> : vector<8xf32>
    %40 = vector.multi_reduction <maximumf>, %39, %cst_22 [1] : vector<8x8xf32> to vector<8xf32>
    %41 = vector.shape_cast %40 : vector<8xf32> to vector<8x1xf32>
    %42 = vector.broadcast %41 : vector<8x1xf32> to vector<8x8xf32>
    %43 = arith.subf %39, %42 : vector<8x8xf32>
    %44 = math.exp %43 : vector<8x8xf32>
    %cst_23 = arith.constant dense<0.000000e+00> : vector<8xf32>
    %45 = vector.multi_reduction <add>, %44, %cst_23 [1] : vector<8x8xf32> to vector<8xf32>
    %46 = vector.shape_cast %45 : vector<8xf32> to vector<8x1xf32>
    %47 = tpu.reciprocal %46 {approx = true} : vector<8x1xf32> -> vector<8x1xf32>
    %cst_24 = arith.constant dense<0.000000e+00> : vector<8x8xf32>
    %48 = tpu.matmul %44, %38, %cst_24 {dimension_numbers = #tpu.dot_dimension_numbers<[1], [0], [0], [1], [0, 0, 1, 1], [], []>} : vector<8x8xf32>, vector<8x8xf32>, vector<8x8xf32> -> vector<8x8xf32>
    %49 = vector.broadcast %47 : vector<8x1xf32> to vector<8x8xf32>
    %50 = arith.mulf %48, %49 : vector<8x8xf32>
    %51 = vector.extract_strided_slice %16 {offsets = [8, 0], sizes = [8, 128], strides = [1, 1]} : vector<128x128xf32> to vector<8x128xf32>
    %cst_25 = arith.constant dense<0.000000e+00> : vector<8x128xf32>
    %52 = tpu.matmul %50, %51, %cst_25 {dimension_numbers = #tpu.dot_dimension_numbers<[1], [0], [0], [1], [0, 0, 1, 1], [], []>} : vector<8x8xf32>, vector<8x128xf32>, vector<8x128xf32> -> vector<8x128xf32>
    %53 = arith.addf %35, %52 : vector<8x128xf32>
    %54 = vector.extract_strided_slice %9 {offsets = [0, 16], sizes = [8, 8], strides = [1, 1]} : vector<16x128xf32> to vector<8x8xf32>
    %55 = vector.extract_strided_slice %12 {offsets = [0, 16], sizes = [8, 8], strides = [1, 1]} : vector<16x128xf32> to vector<8x8xf32>
    %56 = vector.extract_strided_slice %15 {offsets = [0, 16], sizes = [8, 8], strides = [1, 1]} : vector<16x128xf32> to vector<8x8xf32>
    %cst_26 = arith.constant dense<0.000000e+00> : vector<8x8xf32>
    %57 = tpu.matmul %54, %55, %cst_26 {dimension_numbers = #tpu.dot_dimension_numbers<[1], [1], [0], [0], [0, 0, 1, 0], [], []>} : vector<8x8xf32>, vector<8x8xf32>, vector<8x8xf32> -> vector<8x8xf32>
    %cst_27 = arith.constant dense<0xFF800000> : vector<8xf32>
    %58 = vector.multi_reduction <maximumf>, %57, %cst_27 [1] : vector<8x8xf32> to vector<8xf32>
    %59 = vector.shape_cast %58 : vector<8xf32> to vector<8x1xf32>
    %60 = vector.broadcast %59 : vector<8x1xf32> to vector<8x8xf32>
    %61 = arith.subf %57, %60 : vector<8x8xf32>
    %62 = math.exp %61 : vector<8x8xf32>
    %cst_28 = arith.constant dense<0.000000e+00> : vector<8xf32>
    %63 = vector.multi_reduction <add>, %62, %cst_28 [1] : vector<8x8xf32> to vector<8xf32>
    %64 = vector.shape_cast %63 : vector<8xf32> to vector<8x1xf32>
    %65 = tpu.reciprocal %64 {approx = true} : vector<8x1xf32> -> vector<8x1xf32>
    %cst_29 = arith.constant dense<0.000000e+00> : vector<8x8xf32>
    %66 = tpu.matmul %62, %56, %cst_29 {dimension_numbers = #tpu.dot_dimension_numbers<[1], [0], [0], [1], [0, 0, 1, 1], [], []>} : vector<8x8xf32>, vector<8x8xf32>, vector<8x8xf32> -> vector<8x8xf32>
    %67 = vector.broadcast %65 : vector<8x1xf32> to vector<8x8xf32>
    %68 = arith.mulf %66, %67 : vector<8x8xf32>
    %69 = vector.extract_strided_slice %16 {offsets = [16, 0], sizes = [8, 128], strides = [1, 1]} : vector<128x128xf32> to vector<8x128xf32>
    %cst_30 = arith.constant dense<0.000000e+00> : vector<8x128xf32>
    %70 = tpu.matmul %68, %69, %cst_30 {dimension_numbers = #tpu.dot_dimension_numbers<[1], [0], [0], [1], [0, 0, 1, 1], [], []>} : vector<8x8xf32>, vector<8x128xf32>, vector<8x128xf32> -> vector<8x128xf32>
    %71 = arith.addf %53, %70 : vector<8x128xf32>
    %72 = vector.extract_strided_slice %9 {offsets = [0, 24], sizes = [8, 8], strides = [1, 1]} : vector<16x128xf32> to vector<8x8xf32>
    %73 = vector.extract_strided_slice %12 {offsets = [0, 24], sizes = [8, 8], strides = [1, 1]} : vector<16x128xf32> to vector<8x8xf32>
    %74 = vector.extract_strided_slice %15 {offsets = [0, 24], sizes = [8, 8], strides = [1, 1]} : vector<16x128xf32> to vector<8x8xf32>
    %cst_31 = arith.constant dense<0.000000e+00> : vector<8x8xf32>
    %75 = tpu.matmul %72, %73, %cst_31 {dimension_numbers = #tpu.dot_dimension_numbers<[1], [1], [0], [0], [0, 0, 1, 0], [], []>} : vector<8x8xf32>, vector<8x8xf32>, vector<8x8xf32> -> vector<8x8xf32>
    %cst_32 = arith.constant dense<0xFF800000> : vector<8xf32>
    %76 = vector.multi_reduction <maximumf>, %75, %cst_32 [1] : vector<8x8xf32> to vector<8xf32>
    %77 = vector.shape_cast %76 : vector<8xf32> to vector<8x1xf32>
    %78 = vector.broadcast %77 : vector<8x1xf32> to vector<8x8xf32>
    %79 = arith.subf %75, %78 : vector<8x8xf32>
    %80 = math.exp %79 : vector<8x8xf32>
    %cst_33 = arith.constant dense<0.000000e+00> : vector<8xf32>
    %81 = vector.multi_reduction <add>, %80, %cst_33 [1] : vector<8x8xf32> to vector<8xf32>
    %82 = vector.shape_cast %81 : vector<8xf32> to vector<8x1xf32>
    %83 = tpu.reciprocal %82 {approx = true} : vector<8x1xf32> -> vector<8x1xf32>
    %cst_34 = arith.constant dense<0.000000e+00> : vector<8x8xf32>
    %84 = tpu.matmul %80, %74, %cst_34 {dimension_numbers = #tpu.dot_dimension_numbers<[1], [0], [0], [1], [0, 0, 1, 1], [], []>} : vector<8x8xf32>, vector<8x8xf32>, vector<8x8xf32> -> vector<8x8xf32>
    %85 = vector.broadcast %83 : vector<8x1xf32> to vector<8x8xf32>
    %86 = arith.mulf %84, %85 : vector<8x8xf32>
    %87 = vector.extract_strided_slice %16 {offsets = [24, 0], sizes = [8, 128], strides = [1, 1]} : vector<128x128xf32> to vector<8x128xf32>
    %cst_35 = arith.constant dense<0.000000e+00> : vector<8x128xf32>
    %88 = tpu.matmul %86, %87, %cst_35 {dimension_numbers = #tpu.dot_dimension_numbers<[1], [0], [0], [1], [0, 0, 1, 1], [], []>} : vector<8x8xf32>, vector<8x128xf32>, vector<8x128xf32> -> vector<8x128xf32>
    %89 = arith.addf %71, %88 : vector<8x128xf32>
    %c0_36 = arith.constant 0 : index
    %c0_37 = arith.constant 0 : index
    %c0_38 = arith.constant 0 : index
    %90 = vector.load %arg6[%c0_36, %c0_37, %c0_38] : memref<2x8x128xf32, #tpu.memory_space<vmem>>, vector<1x8x128xf32>
    %91 = vector.shape_cast %90 : vector<1x8x128xf32> to vector<8x128xf32>
    %92 = vector.shape_cast %89 : vector<8x128xf32> to vector<1x8x128xf32>
    tpu.vector_store %arg6[%c0_36, %c0_37, %c0_38], %92 {strides = array<i32>} : memref<2x8x128xf32, #tpu.memory_space<vmem>>, vector<1x8x128xf32>,
    %cst_39 = arith.constant 0.000000e+00 : f32
    %93 = vector.broadcast %cst_39 : f32 to vector<8x128xf32>
    %94 = vector.extract_strided_slice %9 {offsets = [8, 0], sizes = [8, 8], strides = [1, 1]} : vector<16x128xf32> to vector<8x8xf32>
    %95 = vector.extract_strided_slice %12 {offsets = [8, 0], sizes = [8, 8], strides = [1, 1]} : vector<16x128xf32> to vector<8x8xf32>
    %96 = vector.extract_strided_slice %15 {offsets = [8, 0], sizes = [8, 8], strides = [1, 1]} : vector<16x128xf32> to vector<8x8xf32>
    %cst_40 = arith.constant dense<0.000000e+00> : vector<8x8xf32>
    %97 = tpu.matmul %94, %95, %cst_40 {dimension_numbers = #tpu.dot_dimension_numbers<[1], [1], [0], [0], [0, 0, 1, 0], [], []>} : vector<8x8xf32>, vector<8x8xf32>, vector<8x8xf32> -> vector<8x8xf32>
    %cst_41 = arith.constant dense<0xFF800000> : vector<8xf32>
    %98 = vector.multi_reduction <maximumf>, %97, %cst_41 [1] : vector<8x8xf32> to vector<8xf32>
    %99 = vector.shape_cast %98 : vector<8xf32> to vector<8x1xf32>
    %100 = vector.broadcast %99 : vector<8x1xf32> to vector<8x8xf32>
    %101 = arith.subf %97, %100 : vector<8x8xf32>
    %102 = math.exp %101 : vector<8x8xf32>
    %cst_42 = arith.constant dense<0.000000e+00> : vector<8xf32>
    %103 = vector.multi_reduction <add>, %102, %cst_42 [1] : vector<8x8xf32> to vector<8xf32>
    %104 = vector.shape_cast %103 : vector<8xf32> to vector<8x1xf32>
    %105 = tpu.reciprocal %104 {approx = true} : vector<8x1xf32> -> vector<8x1xf32>
    %cst_43 = arith.constant dense<0.000000e+00> : vector<8x8xf32>
    %106 = tpu.matmul %102, %96, %cst_43 {dimension_numbers = #tpu.dot_dimension_numbers<[1], [0], [0], [1], [0, 0, 1, 1], [], []>} : vector<8x8xf32>, vector<8x8xf32>, vector<8x8xf32> -> vector<8x8xf32>
    %107 = vector.broadcast %105 : vector<8x1xf32> to vector<8x8xf32>
    %108 = arith.mulf %106, %107 : vector<8x8xf32>
    %109 = vector.extract_strided_slice %16 {offsets = [0, 0], sizes = [8, 128], strides = [1, 1]} : vector<128x128xf32> to vector<8x128xf32>
    %cst_44 = arith.constant dense<0.000000e+00> : vector<8x128xf32>
    %110 = tpu.matmul %108, %109, %cst_44 {dimension_numbers = #tpu.dot_dimension_numbers<[1], [0], [0], [1], [0, 0, 1, 1], [], []>} : vector<8x8xf32>, vector<8x128xf32>, vector<8x128xf32> -> vector<8x128xf32>
    %111 = arith.addf %93, %110 : vector<8x128xf32>
    %112 = vector.extract_strided_slice %9 {offsets = [8, 8], sizes = [8, 8], strides = [1, 1]} : vector<16x128xf32> to vector<8x8xf32>
    %113 = vector.extract_strided_slice %12 {offsets = [8, 8], sizes = [8, 8], strides = [1, 1]} : vector<16x128xf32> to vector<8x8xf32>
    %114 = vector.extract_strided_slice %15 {offsets = [8, 8], sizes = [8, 8], strides = [1, 1]} : vector<16x128xf32> to vector<8x8xf32>
    %cst_45 = arith.constant dense<0.000000e+00> : vector<8x8xf32>
    %115 = tpu.matmul %112, %113, %cst_45 {dimension_numbers = #tpu.dot_dimension_numbers<[1], [1], [0], [0], [0, 0, 1, 0], [], []>} : vector<8x8xf32>, vector<8x8xf32>, vector<8x8xf32> -> vector<8x8xf32>
    %cst_46 = arith.constant dense<0xFF800000> : vector<8xf32>
    %116 = vector.multi_reduction <maximumf>, %115, %cst_46 [1] : vector<8x8xf32> to vector<8xf32>
    %117 = vector.shape_cast %116 : vector<8xf32> to vector<8x1xf32>
    %118 = vector.broadcast %117 : vector<8x1xf32> to vector<8x8xf32>
    %119 = arith.subf %115, %118 : vector<8x8xf32>
    %120 = math.exp %119 : vector<8x8xf32>
    %cst_47 = arith.constant dense<0.000000e+00> : vector<8xf32>
    %121 = vector.multi_reduction <add>, %120, %cst_47 [1] : vector<8x8xf32> to vector<8xf32>
    %122 = vector.shape_cast %121 : vector<8xf32> to vector<8x1xf32>
    %123 = tpu.reciprocal %122 {approx = true} : vector<8x1xf32> -> vector<8x1xf32>
    %cst_48 = arith.constant dense<0.000000e+00> : vector<8x8xf32>
    %124 = tpu.matmul %120, %114, %cst_48 {dimension_numbers = #tpu.dot_dimension_numbers<[1], [0], [0], [1], [0, 0, 1, 1], [], []>} : vector<8x8xf32>, vector<8x8xf32>, vector<8x8xf32> -> vector<8x8xf32>
    %125 = vector.broadcast %123 : vector<8x1xf32> to vector<8x8xf32>
    %126 = arith.mulf %124, %125 : vector<8x8xf32>
    %127 = vector.extract_strided_slice %16 {offsets = [8, 0], sizes = [8, 128], strides = [1, 1]} : vector<128x128xf32> to vector<8x128xf32>
    %cst_49 = arith.constant dense<0.000000e+00> : vector<8x128xf32>
    %128 = tpu.matmul %126, %127, %cst_49 {dimension_numbers = #tpu.dot_dimension_numbers<[1], [0], [0], [1], [0, 0, 1, 1], [], []>} : vector<8x8xf32>, vector<8x128xf32>, vector<8x128xf32> -> vector<8x128xf32>
    %129 = arith.addf %111, %128 : vector<8x128xf32>
    %130 = vector.extract_strided_slice %9 {offsets = [8, 16], sizes = [8, 8], strides = [1, 1]} : vector<16x128xf32> to vector<8x8xf32>
    %131 = vector.extract_strided_slice %12 {offsets = [8, 16], sizes = [8, 8], strides = [1, 1]} : vector<16x128xf32> to vector<8x8xf32>
    %132 = vector.extract_strided_slice %15 {offsets = [8, 16], sizes = [8, 8], strides = [1, 1]} : vector<16x128xf32> to vector<8x8xf32>
    %cst_50 = arith.constant dense<0.000000e+00> : vector<8x8xf32>
    %133 = tpu.matmul %130, %131, %cst_50 {dimension_numbers = #tpu.dot_dimension_numbers<[1], [1], [0], [0], [0, 0, 1, 0], [], []>} : vector<8x8xf32>, vector<8x8xf32>, vector<8x8xf32> -> vector<8x8xf32>
    %cst_51 = arith.constant dense<0xFF800000> : vector<8xf32>
    %134 = vector.multi_reduction <maximumf>, %133, %cst_51 [1] : vector<8x8xf32> to vector<8xf32>
    %135 = vector.shape_cast %134 : vector<8xf32> to vector<8x1xf32>
    %136 = vector.broadcast %135 : vector<8x1xf32> to vector<8x8xf32>
    %137 = arith.subf %133, %136 : vector<8x8xf32>
    %138 = math.exp %137 : vector<8x8xf32>
    %cst_52 = arith.constant dense<0.000000e+00> : vector<8xf32>
    %139 = vector.multi_reduction <add>, %138, %cst_52 [1] : vector<8x8xf32> to vector<8xf32>
    %140 = vector.shape_cast %139 : vector<8xf32> to vector<8x1xf32>
    %141 = tpu.reciprocal %140 {approx = true} : vector<8x1xf32> -> vector<8x1xf32>
    %cst_53 = arith.constant dense<0.000000e+00> : vector<8x8xf32>
    %142 = tpu.matmul %138, %132, %cst_53 {dimension_numbers = #tpu.dot_dimension_numbers<[1], [0], [0], [1], [0, 0, 1, 1], [], []>} : vector<8x8xf32>, vector<8x8xf32>, vector<8x8xf32> -> vector<8x8xf32>
    %143 = vector.broadcast %141 : vector<8x1xf32> to vector<8x8xf32>
    %144 = arith.mulf %142, %143 : vector<8x8xf32>
    %145 = vector.extract_strided_slice %16 {offsets = [16, 0], sizes = [8, 128], strides = [1, 1]} : vector<128x128xf32> to vector<8x128xf32>
    %cst_54 = arith.constant dense<0.000000e+00> : vector<8x128xf32>
    %146 = tpu.matmul %144, %145, %cst_54 {dimension_numbers = #tpu.dot_dimension_numbers<[1], [0], [0], [1], [0, 0, 1, 1], [], []>} : vector<8x8xf32>, vector<8x128xf32>, vector<8x128xf32> -> vector<8x128xf32>
    %147 = arith.addf %129, %146 : vector<8x128xf32>
    %148 = vector.extract_strided_slice %9 {offsets = [8, 24], sizes = [8, 8], strides = [1, 1]} : vector<16x128xf32> to vector<8x8xf32>
    %149 = vector.extract_strided_slice %12 {offsets = [8, 24], sizes = [8, 8], strides = [1, 1]} : vector<16x128xf32> to vector<8x8xf32>
    %150 = vector.extract_strided_slice %15 {offsets = [8, 24], sizes = [8, 8], strides = [1, 1]} : vector<16x128xf32> to vector<8x8xf32>
    %cst_55 = arith.constant dense<0.000000e+00> : vector<8x8xf32>
    %151 = tpu.matmul %148, %149, %cst_55 {dimension_numbers = #tpu.dot_dimension_numbers<[1], [1], [0], [0], [0, 0, 1, 0], [], []>} : vector<8x8xf32>, vector<8x8xf32>, vector<8x8xf32> -> vector<8x8xf32>
    %cst_56 = arith.constant dense<0xFF800000> : vector<8xf32>
    %152 = vector.multi_reduction <maximumf>, %151, %cst_56 [1] : vector<8x8xf32> to vector<8xf32>
    %153 = vector.shape_cast %152 : vector<8xf32> to vector<8x1xf32>
    %154 = vector.broadcast %153 : vector<8x1xf32> to vector<8x8xf32>
    %155 = arith.subf %151, %154 : vector<8x8xf32>
    %156 = math.exp %155 : vector<8x8xf32>
    %cst_57 = arith.constant dense<0.000000e+00> : vector<8xf32>
    %157 = vector.multi_reduction <add>, %156, %cst_57 [1] : vector<8x8xf32> to vector<8xf32>
    %158 = vector.shape_cast %157 : vector<8xf32> to vector<8x1xf32>
    %159 = tpu.reciprocal %158 {approx = true} : vector<8x1xf32> -> vector<8x1xf32>
    %cst_58 = arith.constant dense<0.000000e+00> : vector<8x8xf32>
    %160 = tpu.matmul %156, %150, %cst_58 {dimension_numbers = #tpu.dot_dimension_numbers<[1], [0], [0], [1], [0, 0, 1, 1], [], []>} : vector<8x8xf32>, vector<8x8xf32>, vector<8x8xf32> -> vector<8x8xf32>
    %161 = vector.broadcast %159 : vector<8x1xf32> to vector<8x8xf32>
    %162 = arith.mulf %160, %161 : vector<8x8xf32>
    %163 = vector.extract_strided_slice %16 {offsets = [24, 0], sizes = [8, 128], strides = [1, 1]} : vector<128x128xf32> to vector<8x128xf32>
    %cst_59 = arith.constant dense<0.000000e+00> : vector<8x128xf32>
    %164 = tpu.matmul %162, %163, %cst_59 {dimension_numbers = #tpu.dot_dimension_numbers<[1], [0], [0], [1], [0, 0, 1, 1], [], []>} : vector<8x8xf32>, vector<8x128xf32>, vector<8x128xf32> -> vector<8x128xf32>
    %165 = arith.addf %147, %164 : vector<8x128xf32>
    %c1 = arith.constant 1 : index
    %c0_60 = arith.constant 0 : index
    %c0_61 = arith.constant 0 : index
    %166 = vector.load %arg6[%c1, %c0_60, %c0_61] : memref<2x8x128xf32, #tpu.memory_space<vmem>>, vector<1x8x128xf32>
    %167 = vector.shape_cast %166 : vector<1x8x128xf32> to vector<8x128xf32>
    %168 = vector.shape_cast %165 : vector<8x128xf32> to vector<1x8x128xf32>
    tpu.vector_store %arg6[%c1, %c0_60, %c0_61], %168 {strides = array<i32>} : memref<2x8x128xf32, #tpu.memory_space<vmem>>, vector<1x8x128xf32>,
    return
  }
  func.func @transform_0(%arg0: i32) -> (i32, i32, i32) {
    %c0_i32 = arith.constant 0 : i32
    %c0_i32_0 = arith.constant 0 : i32
    %c0_i32_1 = arith.constant 0 : i32
    return %arg0, %c0_i32, %c0_i32_0 : i32, i32, i32
  }
  func.func @transform_1(%arg0: i32) -> (i32, i32, i32) {
    %c0_i32 = arith.constant 0 : i32
    %c0_i32_0 = arith.constant 0 : i32
    %c0_i32_1 = arith.constant 0 : i32
    return %arg0, %c0_i32, %c0_i32_0 : i32, i32, i32
  }
  func.func @transform_2(%arg0: i32) -> (i32, i32, i32) {
    %c0_i32 = arith.constant 0 : i32
    %c0_i32_0 = arith.constant 0 : i32
    %c0_i32_1 = arith.constant 0 : i32
    return %arg0, %c0_i32, %c0_i32_0 : i32, i32, i32
  }
  func.func @transform_3(%arg0: i32) -> (i32, i32, i32) {
    %c0_i32 = arith.constant 0 : i32
    %c0_i32_0 = arith.constant 0 : i32
    %c0_i32_1 = arith.constant 0 : i32
    %c0_i32_2 = arith.constant 0 : i32
    return %c0_i32, %c0_i32_0, %c0_i32_1 : i32, i32, i32
  }
  func.func @transform_4(%arg0: i32) -> (i32, i32) {
    %c0_i32 = arith.constant 0 : i32
    %c0_i32_0 = arith.constant 0 : i32
    %c0_i32_1 = arith.constant 0 : i32
    return %c0_i32, %c0_i32_0 : i32, i32
  }
  func.func @transform_5(%arg0: i32) -> (i32, i32, i32) {
    %c0_i32 = arith.constant 0 : i32
    %c0_i32_0 = arith.constant 0 : i32
    %c0_i32_1 = arith.constant 0 : i32
    return %arg0, %c0_i32, %c0_i32_0 : i32, i32, i32
  }
}

</mosaic_0001>

<llo_original>
// kernel: tpu_custom_call.1
$region0: #{tpu_custom_call.1}
  #allocation0 [shape = 'u32[]', space=smem, size = 0x4, offset = 0x4, fixed_abs, tag = 'smem constant byte address 0x4 - core index']
  #allocation1 [shape = 'u32[144,128]{1,0:T(1,128)}', space=vmem, size = 0x12000, scoped, tag = 'internal scratch']
  %s0 = inlined_call_operand.hbm [shape: f32[4,8,128], index: 0, kind: input, shape index: {}]
  %s1 = inlined_call_operand.hbm [shape: f32[4,8,128], index: 1, kind: input, shape index: {}]
  %s2 = inlined_call_operand.hbm [shape: f32[4,8,128], index: 2, kind: input, shape index: {}]
  %s3 = inlined_call_operand.hbm [shape: f32[3,128,128], index: 3, kind: input, shape index: {}]
  %s4 = inlined_call_operand.hbm [shape: f32[128,128], index: 4, kind: input, shape index: {}]
  %s5 = inlined_call_operand.hbm [shape: f32[4,8,128], index: 5, kind: output, shape index: {}]
  %s6 = sld [smem:[#allocation0]]
  $region73: #{tpu_custom_call.1} parent=0
    _
  %s8 = ssub.s32 1, %s6
  %s9 = scalar_select 0, %s8, %s6
  $region1: #{tpu_custom_call.1} parent=0
    #allocation2 [shape = 'u8[16384]{0}', space=vmem, size = 0x4000, scoped, tag = 'input window, operand 0']
    #allocation3 [shape = 's32[2]{0}', space=sflag, size = 0x8, scoped, tag = 'scoped memory for tpu_custom_call.1']
    #allocation4 [shape = 's32[2]{0}', space=sflag, size = 0x8, scoped, tag = 'scoped memory for tpu_custom_call.1']
    #allocation5 [shape = 'u8[16384]{0}', space=vmem, size = 0x4000, scoped, tag = 'input window, operand 1']
    #allocation6 [shape = 's32[2]{0}', space=sflag, size = 0x8, scoped, tag = 'scoped memory for tpu_custom_call.1']
    #allocation7 [shape = 'u8[16384]{0}', space=vmem, size = 0x4000, scoped, tag = 'input window, operand 2']
    #allocation8 [shape = 'u8[196608]{0}', space=vmem, size = 0x30000, scoped, tag = 'input window, operand 3, single buffered']
    #allocation9 [shape = 's32[1]{0}', space=sflag, size = 0x4, scoped, tag = 'scoped memory for tpu_custom_call.1']
    #allocation10 [shape = 'u8[65536]{0}', space=vmem, size = 0x10000, scoped, tag = 'input window, operand 4, single buffered']
    #allocation11 [shape = 'u8[16384]{0}', space=vmem, size = 0x4000, scoped, tag = 'output window, operand 0']
    %10 = vsyncpa [#allocation3], 0
    %s11 = scalar_lea.sflag [#allocation3], 1
    %12 = vsyncpa %s11, 0
    %13 = vsyncpa [#allocation6], 0
    %s14 = scalar_lea.sflag [#allocation6], 1
    %15 = vsyncpa %s14, 0
    %16 = vsyncpa [#allocation9], 0
    %17 = vsyncpa [#allocation4], 0
    %s18 = scalar_lea.sflag [#allocation4], 1
    %19 = vsyncpa %s18, 0
    loop: start=0, step=1, limit=4
    $region2: #{tpu_custom_call.1} parent=1 // loop_pre_header
      _
    $region3: #{tpu_custom_call.1} parent=1 // loop_header
      %s21 = sphi 0, %s25
      %p22 = scmp.ge.s32.totalorder %s21, 4
      %s31 = sphi 0, %s33
      %s34 = sphi 0, %s31
      %s35 = sphi 0, %s34
      %s51 = sphi 0, %s35
      %s57 = sphi 0, %s59
      %s60 = sphi 0, %s57
      %s61 = sphi 0, %s60
      %s77 = sphi 0, %s61
      %s83 = sphi 0, %s85
      %s86 = sphi 0, %s83
      %s87 = sphi 0, %s86
      %s103 = sphi 0, %s87
      %s107 = sphi 0, %s107
      %s109 = sphi 0, %s107
      %s110 = sphi 0, %s109
      %s124 = sphi 0, %s110
      %s128 = sphi 0, %s128
      %s130 = sphi 0, %s128
      %s131 = sphi 0, %s130
      %s145 = sphi 0, %s131
      %s151 = sphi 0, %s153
      %s154 = sphi 0, %s151
      %s155 = sphi 0, %s154
      %s171 = sphi 0, %s155
    $region4: #{tpu_custom_call.1} parent=1 // loop_header_branch
      %24 = sbr.rel (%p22) target = $region8
    $region5: #{tpu_custom_call.1} parent=1 // loop_body
      %s26 = ssub.s32 %s21, 1
      %s27 = ssub.s32 %s21, 2
      %s28 = sadd.s32 %s21, 1
      %s29 = ssub.s32 %s21, %s28
      %p30 = scmp.eq.s32.totalorder %s29, 0
      %s32 = sadd.s32 %s31, 1
      %s33 = scalar_select %p30, %s31, %s32
      %p36 = pneg %p30
      %p37 = scmp.eq.s32.totalorder %s21, 1
      %p38 = por %p36, %p37
      %p39 = scmp.ne.s32.totalorder %s31, %s34
      %p40 = scmp.eq.s32.totalorder %s21, 0
      %p41 = por %p39, %p40
      %p42 = scmp.ne.s32.totalorder %s31, %s34
      %p43 = scmp.eq.s32.totalorder %s26, 1
      %p44 = por %p42, %p43
      %p45 = scmp.ne.s32.totalorder %s34, %s35
      %p46 = scmp.eq.s32.totalorder %s26, 0
      %p47 = por %p45, %p46
      %p48 = scmp.ne.s32.totalorder %s34, %s35
      %p49 = scmp.eq.s32.totalorder %s27, 1
      %p50 = por %p48, %p49
      %p52 = scmp.ne.s32.totalorder %s35, %s51
      %p53 = scmp.eq.s32.totalorder %s27, 0
      %p54 = por %p52, %p53
      %s55 = ssub.s32 %s21, %s28
      %p56 = scmp.eq.s32.totalorder %s55, 0
      %s58 = sadd.s32 %s57, 1
      %s59 = scalar_select %p56, %s57, %s58
      %p62 = pneg %p56
      %p63 = scmp.eq.s32.totalorder %s21, 1
      %p64 = por %p62, %p63
      %p65 = scmp.ne.s32.totalorder %s57, %s60
      %p66 = scmp.eq.s32.totalorder %s21, 0
      %p67 = por %p65, %p66
      %p68 = scmp.ne.s32.totalorder %s57, %s60
      %p69 = scmp.eq.s32.totalorder %s26, 1
      %p70 = por %p68, %p69
      %p71 = scmp.ne.s32.totalorder %s60, %s61
      %p72 = scmp.eq.s32.totalorder %s26, 0
      %p73 = por %p71, %p72
      %p74 = scmp.ne.s32.totalorder %s60, %s61
      %p75 = scmp.eq.s32.totalorder %s27, 1
      %p76 = por %p74, %p75
      %p78 = scmp.ne.s32.totalorder %s61, %s77
      %p79 = scmp.eq.s32.totalorder %s27, 0
      %p80 = por %p78, %p79
      %s81 = ssub.s32 %s21, %s28
      %p82 = scmp.eq.s32.totalorder %s81, 0
      %s84 = sadd.s32 %s83, 1
      %s85 = scalar_select %p82, %s83, %s84
      %p88 = pneg %p82
      %p89 = scmp.eq.s32.totalorder %s21, 1
      %p90 = por %p88, %p89
      %p91 = scmp.ne.s32.totalorder %s83, %s86
      %p92 = scmp.eq.s32.totalorder %s21, 0
      %p93 = por %p91, %p92
      %p94 = scmp.ne.s32.totalorder %s83, %s86
      %p95 = scmp.eq.s32.totalorder %s26, 1
      %p96 = por %p94, %p95
      %p97 = scmp.ne.s32.totalorder %s86, %s87
      %p98 = scmp.eq.s32.totalorder %s26, 0
      %p99 = por %p97, %p98
      %p100 = scmp.ne.s32.totalorder %s86, %s87
      %p101 = scmp.eq.s32.totalorder %s27, 1
      %p102 = por %p100, %p101
      %p104 = scmp.ne.s32.totalorder %s87, %s103
      %p105 = scmp.eq.s32.totalorder %s27, 0
      %p106 = por %p104, %p105
      %s108 = sadd.s32 %s107, 1
      %p111 = scmp.eq.s32.totalorder %s21, 1
      %p112 = scmp.ne.s32.totalorder %s107, %s109
      %p113 = scmp.eq.s32.totalorder %s21, 0
      %p114 = por %p112, %p113
      %p115 = scmp.ne.s32.totalorder %s107, %s109
      %p116 = scmp.eq.s32.totalorder %s26, 1
      %p117 = por %p115, %p116
      %p118 = scmp.ne.s32.totalorder %s109, %s110
      %p119 = scmp.eq.s32.totalorder %s26, 0
      %p120 = por %p118, %p119
      %p121 = scmp.ne.s32.totalorder %s109, %s110
      %p122 = scmp.eq.s32.totalorder %s27, 1
      %p123 = por %p121, %p122
      %p125 = scmp.ne.s32.totalorder %s110, %s124
      %p126 = scmp.eq.s32.totalorder %s27, 0
      %p127 = por %p125, %p126
      %s129 = sadd.s32 %s128, 1
      %p132 = scmp.eq.s32.totalorder %s21, 1
      %p133 = scmp.ne.s32.totalorder %s128, %s130
      %p134 = scmp.eq.s32.totalorder %s21, 0
      %p135 = por %p133, %p134
      %p136 = scmp.ne.s32.totalorder %s128, %s130
      %p137 = scmp.eq.s32.totalorder %s26, 1
      %p138 = por %p136, %p137
      %p139 = scmp.ne.s32.totalorder %s130, %s131
      %p140 = scmp.eq.s32.totalorder %s26, 0
      %p141 = por %p139, %p140
      %p142 = scmp.ne.s32.totalorder %s130, %s131
      %p143 = scmp.eq.s32.totalorder %s27, 1
      %p144 = por %p142, %p143
      %p146 = scmp.ne.s32.totalorder %s131, %s145
      %p147 = scmp.eq.s32.totalorder %s27, 0
      %p148 = por %p146, %p147
      %s149 = ssub.s32 %s21, %s28
      %p150 = scmp.eq.s32.totalorder %s149, 0
      %s152 = sadd.s32 %s151, 1
      %s153 = scalar_select %p150, %s151, %s152
      %p156 = pneg %p150
      %p157 = scmp.eq.s32.totalorder %s21, 1
      %p158 = por %p156, %p157
      %p159 = scmp.ne.s32.totalorder %s151, %s154
      %p160 = scmp.eq.s32.totalorder %s21, 0
      %p161 = por %p159, %p160
      %p162 = scmp.ne.s32.totalorder %s151, %s154
      %p163 = scmp.eq.s32.totalorder %s26, 1
      %p164 = por %p162, %p163
      %p165 = scmp.ne.s32.totalorder %s154, %s155
      %p166 = scmp.eq.s32.totalorder %s26, 0
      %p167 = por %p165, %p166
      %p168 = scmp.ne.s32.totalorder %s154, %s155
      %p169 = scmp.eq.s32.totalorder %s27, 1
      %p170 = por %p168, %p169
      %p172 = scmp.ne.s32.totalorder %s155, %s171
      %p173 = scmp.eq.s32.totalorder %s27, 0
      %p174 = por %p172, %p173
      %p175 = scmp.le.s32.totalorder 1, %s21
      %p176 = scmp.lt.s32.totalorder %s21, 3
      %p177 = pnand %p175, %p176
      %p178 = pneg %p177
      // Predicated region
      $region9: #{tpu_custom_call.1} parent=5 // pred_check
        _
      $region10: #{tpu_custom_call.1} parent=5 // pred_check_branch
        %180 = sbr.rel (%p177) target = $region12
      $region11: #{tpu_custom_call.1} parent=5 // pred_region
        %s181 = ssub.s32 %s21, 1
        // Predicated region
        $region13: #{tpu_custom_call.1} parent=11 // pred_check
          %p182 = pneg %p120
        $region14: #{tpu_custom_call.1} parent=11 // pred_check_branch
          %184 = sbr.rel (%p182) target = $region16
        $region15: #{tpu_custom_call.1} parent=11 // pred_region
          %s186 = ssub.s32 6144, 6144
          %187 = vsyncadd [#allocation9], %s186
          %s188 = sshll.u32 [#allocation8], 4
          %s189 = int_to_ptr.vmem [resolvable:$true] %s188
          %194 = dma.hbm_to_vmem [thread:$0]  %s3, 6144, %s189, [#allocation9], 128, 128, 8
        $region16: #{tpu_custom_call.1} parent=11 // pred_fallthru
          _
        // Predicated region
        $region17: #{tpu_custom_call.1} parent=11 // pred_check
          %p195 = pneg %p141
        $region18: #{tpu_custom_call.1} parent=11 // pred_check_branch
          %197 = sbr.rel (%p195) target = $region20
        $region19: #{tpu_custom_call.1} parent=11 // pred_region
          %s199 = ssub.s32 2048, 2048
          %200 = vsyncadd [#allocation9], %s199
          %s201 = sshll.u32 [#allocation10], 4
          %s202 = int_to_ptr.vmem [resolvable:$true] %s201
          %207 = dma.hbm_to_vmem [thread:$0]  %s4, 2048, %s202, [#allocation9], 128, 128, 8
        $region20: #{tpu_custom_call.1} parent=11 // pred_fallthru
          _
      $region12: #{tpu_custom_call.1} parent=5 // pred_fallthru
        _
      %p208 = scmp.lt.s32.totalorder %s21, 2
      // Predicated region
      $region21: #{tpu_custom_call.1} parent=5 // pred_check
        %p209 = pneg %p208
      $region22: #{tpu_custom_call.1} parent=5 // pred_check_branch
        %211 = sbr.rel (%p209) target = $region24
      $region23: #{tpu_custom_call.1} parent=5 // pred_region
        // Predicated region
        $region25: #{tpu_custom_call.1} parent=23 // pred_check
          %p212 = pneg %p41
        $region26: #{tpu_custom_call.1} parent=23 // pred_check_branch
          %214 = sbr.rel (%p212) target = $region28
        $region27: #{tpu_custom_call.1} parent=23 // pred_region
          %s215 = sand.u32 %s31, 1
          %s216 = scalar_lea.sflag [#allocation3], %s215
          %s217 = sand.u32 %s31, 1
          %s218 = smul.addr %s217, 16
          %s219 = scalar_lea.vmem [#allocation2], %s218
          %s220 = smul.u32 2, %s21
          %s222 = ssub.s32 256, 256
          %223 = vsyncadd %s216, %s222
          %s224 = smul.addr %s220, 128
          %s225 = scalar_lea.hbm %s0, %s224
          %s226 = sshll.u32 %s219, 4
          %s227 = int_to_ptr.vmem [resolvable:$true] %s226
          %232 = dma.hbm_to_vmem [thread:$0]  %s225, 256, %s227, %s216, 128, 128, 8
        $region28: #{tpu_custom_call.1} parent=23 // pred_fallthru
          _
        // Predicated region
        $region29: #{tpu_custom_call.1} parent=23 // pred_check
          %p233 = pneg %p67
        $region30: #{tpu_custom_call.1} parent=23 // pred_check_branch
          %235 = sbr.rel (%p233) target = $region32
        $region31: #{tpu_custom_call.1} parent=23 // pred_region
          %s236 = sand.u32 %s21, 1
          %s237 = scalar_lea.sflag [#allocation6], %s236
          %s238 = sand.u32 %s57, 1
          %s239 = smul.addr %s238, 16
          %s240 = scalar_lea.vmem [#allocation5], %s239
          %s241 = smul.u32 2, %s21
          %s243 = ssub.s32 256, 256
          %244 = vsyncadd %s237, %s243
          %s245 = smul.addr %s241, 128
          %s246 = scalar_lea.hbm %s1, %s245
          %s247 = sshll.u32 %s240, 4
          %s248 = int_to_ptr.vmem [resolvable:$true] %s247
          %253 = dma.hbm_to_vmem [thread:$0]  %s246, 256, %s248, %s237, 128, 128, 8
        $region32: #{tpu_custom_call.1} parent=23 // pred_fallthru
          _
        // Predicated region
        $region33: #{tpu_custom_call.1} parent=23 // pred_check
          %p254 = pneg %p93
        $region34: #{tpu_custom_call.1} parent=23 // pred_check_branch
          %256 = sbr.rel (%p254) target = $region36
        $region35: #{tpu_custom_call.1} parent=23 // pred_region
          %s257 = sand.u32 %s21, 1
          %s258 = scalar_lea.sflag [#allocation6], %s257
          %s259 = sand.u32 %s83, 1
          %s260 = smul.addr %s259, 16
          %s261 = scalar_lea.vmem [#allocation7], %s260
          %s262 = smul.u32 2, %s21
          %s264 = ssub.s32 256, 256
          %265 = vsyncadd %s258, %s264
          %s266 = smul.addr %s262, 128
          %s267 = scalar_lea.hbm %s2, %s266
          %s268 = sshll.u32 %s261, 4
          %s269 = int_to_ptr.vmem [resolvable:$true] %s268
          %274 = dma.hbm_to_vmem [thread:$0]  %s267, 256, %s269, %s258, 128, 128, 8
        $region36: #{tpu_custom_call.1} parent=23 // pred_fallthru
          _
      $region24: #{tpu_custom_call.1} parent=5 // pred_fallthru
        _
      %p275 = scmp.le.s32.totalorder 1, %s21
      %p276 = scmp.lt.s32.totalorder %s21, 3
      %p277 = pnand %p275, %p276
      %p278 = pneg %p277
      // Predicated region
      $region37: #{tpu_custom_call.1} parent=5 // pred_check
        _
      $region38: #{tpu_custom_call.1} parent=5 // pred_check_branch
        %280 = sbr.rel (%p277) target = $region40
      $region39: #{tpu_custom_call.1} parent=5 // pred_region
        %s281 = ssub.s32 %s21, 1
        %s282 = sand.u32 %s34, 1
        %s283 = scalar_lea.sflag [#allocation3], %s282
        %s284 = sand.u32 %s34, 1
        %s285 = smul.addr %s284, 16
        %s286 = scalar_lea.vmem [#allocation2], %s285
        // Predicated region
        $region41: #{tpu_custom_call.1} parent=39 // pred_check
          %p287 = pneg %p47
        $region42: #{tpu_custom_call.1} parent=39 // pred_check_branch
          %289 = sbr.rel (%p287) target = $region44
        $region43: #{tpu_custom_call.1} parent=39 // pred_region
          %290 = dma.done %s283, 256
        $region44: #{tpu_custom_call.1} parent=39 // pred_fallthru
          _
        %s291 = sand.u32 %s26, 1
        %s292 = scalar_lea.sflag [#allocation6], %s291
        %s293 = sand.u32 %s60, 1
        %s294 = smul.addr %s293, 16
        %s295 = scalar_lea.vmem [#allocation5], %s294
        // Predicated region
        $region45: #{tpu_custom_call.1} parent=39 // pred_check
          %p296 = pneg %p73
        $region46: #{tpu_custom_call.1} parent=39 // pred_check_branch
          %298 = sbr.rel (%p296) target = $region48
        $region47: #{tpu_custom_call.1} parent=39 // pred_region
          %299 = dma.done %s292, 256
        $region48: #{tpu_custom_call.1} parent=39 // pred_fallthru
          _
        %s300 = sand.u32 %s26, 1
        %s301 = scalar_lea.sflag [#allocation6], %s300
        %s302 = sand.u32 %s86, 1
        %s303 = smul.addr %s302, 16
        %s304 = scalar_lea.vmem [#allocation7], %s303
        // Predicated region
        $region49: #{tpu_custom_call.1} parent=39 // pred_check
          %p305 = pneg %p99
        $region50: #{tpu_custom_call.1} parent=39 // pred_check_branch
          %307 = sbr.rel (%p305) target = $region52
        $region51: #{tpu_custom_call.1} parent=39 // pred_region
          %308 = dma.done %s301, 256
        $region52: #{tpu_custom_call.1} parent=39 // pred_fallthru
          _
        // Predicated region
        $region53: #{tpu_custom_call.1} parent=39 // pred_check
          %p309 = pneg %p120
        $region54: #{tpu_custom_call.1} parent=39 // pred_check_branch
          %311 = sbr.rel (%p309) target = $region56
        $region55: #{tpu_custom_call.1} parent=39 // pred_region
          %312 = dma.done [#allocation9], 6144
        $region56: #{tpu_custom_call.1} parent=39 // pred_fallthru
          _
        // Predicated region
        $region57: #{tpu_custom_call.1} parent=39 // pred_check
          %p313 = pneg %p141
        $region58: #{tpu_custom_call.1} parent=39 // pred_check_branch
          %315 = sbr.rel (%p313) target = $region60
        $region59: #{tpu_custom_call.1} parent=39 // pred_region
          %316 = dma.done [#allocation9], 2048
        $region60: #{tpu_custom_call.1} parent=39 // pred_fallthru
          _
        %s317 = sand.u32 %s34, 1
        %s318 = scalar_lea.sflag [#allocation3], %s317
        %s319 = sand.u32 %s34, 1
        %s320 = smul.addr %s319, 16
        %s321 = scalar_lea.vmem [#allocation2], %s320
        %p322 = pneg %p47
        %p323 = pneg %p44
        %s324 = sand.u32 %s26, 1
        %s325 = scalar_lea.sflag [#allocation6], %s324
        %s326 = sand.u32 %s60, 1
        %s327 = smul.addr %s326, 16
        %s328 = scalar_lea.vmem [#allocation5], %s327
        %p329 = pneg %p73
        %p330 = pneg %p70
        %s331 = sand.u32 %s26, 1
        %s332 = scalar_lea.sflag [#allocation6], %s331
        %s333 = sand.u32 %s86, 1
        %s334 = smul.addr %s333, 16
        %s335 = scalar_lea.vmem [#allocation7], %s334
        %p336 = pneg %p99
        %p337 = pneg %p96
        %p338 = pneg %p120
        %p339 = pneg %p117
        %p340 = pneg %p141
        %p341 = pneg %p138
        %p342 = pneg %p167
        %p343 = pneg %p164
        %s344 = sand.u32 %s154, 1
        %s345 = scalar_lea.sflag [#allocation4], %s344
        %s346 = sand.u32 %s154, 1
        %s347 = smul.addr %s346, 16
        %s348 = scalar_lea.vmem [#allocation11], %s347
        %s349 = smul.u32 2, %s26
        %s350 = smul.u32 2, %s26
        %s351 = smul.u32 2, %s26
        %s352 = smul.u32 2, %s26
        %v353 = vld [vmem:[%s286] sm:$0xff]
        %v354 = vld [vmem:[%s286 + $0x8] sm:$0xff]
        %v355 = vld [vmem:[%s295] sm:$0xff]
        %v356 = vld [vmem:[%s295 + $0x8] sm:$0xff]
        %v357 = vld [vmem:[%s304] sm:$0xff]
        %v358 = vld [vmem:[%s304 + $0x8] sm:$0xff]
        %v359 = vld [vmem:[#allocation8] sm:$0xff]
        %v360 = vld [vmem:[#allocation8 + $0x8] sm:$0xff]
        %v361 = vld [vmem:[#allocation8 + $0x10] sm:$0xff]
        %v362 = vld [vmem:[#allocation8 + $0x18] sm:$0xff]
        %v363 = vld [vmem:[#allocation8 + $0x20] sm:$0xff]
        %v364 = vld [vmem:[#allocation8 + $0x28] sm:$0xff]
        %v365 = vld [vmem:[#allocation8 + $0x30] sm:$0xff]
        %v366 = vld [vmem:[#allocation8 + $0x38] sm:$0xff]
        %v367 = vld [vmem:[#allocation8 + $0x40] sm:$0xff]
        %v368 = vld [vmem:[#allocation8 + $0x48] sm:$0xff]
        %v369 = vld [vmem:[#allocation8 + $0x50] sm:$0xff]
        %v370 = vld [vmem:[#allocation8 + $0x58] sm:$0xff]
        %v371 = vld [vmem:[#allocation8 + $0x60] sm:$0xff]
        %v372 = vld [vmem:[#allocation8 + $0x68] sm:$0xff]
        %v373 = vld [vmem:[#allocation8 + $0x70] sm:$0xff]
        %v374 = vld [vmem:[#allocation8 + $0x78] sm:$0xff]
        %v375 = vld [vmem:[#allocation8 + $0x80] sm:$0xff]
        %v376 = vld [vmem:[#allocation8 + $0x88] sm:$0xff]
        %v377 = vld [vmem:[#allocation8 + $0x90] sm:$0xff]
        %v378 = vld [vmem:[#allocation8 + $0x98] sm:$0xff]
        %v379 = vld [vmem:[#allocation8 + $0xa0] sm:$0xff]
        %v380 = vld [vmem:[#allocation8 + $0xa8] sm:$0xff]
        %v381 = vld [vmem:[#allocation8 + $0xb0] sm:$0xff]
        %v382 = vld [vmem:[#allocation8 + $0xb8] sm:$0xff]
        %v383 = vld [vmem:[#allocation8 + $0xc0] sm:$0xff]
        %v384 = vld [vmem:[#allocation8 + $0xc8] sm:$0xff]
        %v385 = vld [vmem:[#allocation8 + $0xd0] sm:$0xff]
        %v386 = vld [vmem:[#allocation8 + $0xd8] sm:$0xff]
        %v387 = vld [vmem:[#allocation8 + $0xe0] sm:$0xff]
        %v388 = vld [vmem:[#allocation8 + $0xe8] sm:$0xff]
        %v389 = vld [vmem:[#allocation8 + $0xf0] sm:$0xff]
        %v390 = vld [vmem:[#allocation8 + $0xf8] sm:$0xff]
        %v391 = vld [vmem:[#allocation8 + $0x100] sm:$0xff]
        %v392 = vld [vmem:[#allocation8 + $0x108] sm:$0xff]
        %v393 = vld [vmem:[#allocation8 + $0x110] sm:$0xff]
        %v394 = vld [vmem:[#allocation8 + $0x118] sm:$0xff]
        %v395 = vld [vmem:[#allocation8 + $0x120] sm:$0xff]
        %v396 = vld [vmem:[#allocation8 + $0x128] sm:$0xff]
        %v397 = vld [vmem:[#allocation8 + $0x130] sm:$0xff]
        %v398 = vld [vmem:[#allocation8 + $0x138] sm:$0xff]
        %v399 = vld [vmem:[#allocation8 + $0x140] sm:$0xff]
        %v400 = vld [vmem:[#allocation8 + $0x148] sm:$0xff]
        %v401 = vld [vmem:[#allocation8 + $0x150] sm:$0xff]
        %v402 = vld [vmem:[#allocation8 + $0x158] sm:$0xff]
        %v403 = vld [vmem:[#allocation8 + $0x160] sm:$0xff]
        %v404 = vld [vmem:[#allocation8 + $0x168] sm:$0xff]
        %v405 = vld [vmem:[#allocation8 + $0x170] sm:$0xff]
        %v406 = vld [vmem:[#allocation8 + $0x178] sm:$0xff]
        %407 = vmatprep.subr.mxu0 0.0
        %408 = vmatpush1.msra.mxu0 %v374
        %409 = vmatprep.subr.mxu0 0.0
        %410 = vmatpush1.msra.mxu0 %v373
        %411 = vmatprep.subr.mxu0 0.0
        %412 = vmatpush1.msra.mxu0 %v372
        %413 = vmatprep.subr.mxu0 0.0
        %414 = vmatpush1.msra.mxu0 %v371
        %415 = vmatprep.subr.mxu0 0.0
        %416 = vmatpush1.msra.mxu0 %v370
        %417 = vmatprep.subr.mxu0 0.0
        %418 = vmatpush1.msra.mxu0 %v369
        %419 = vmatprep.subr.mxu0 0.0
        %420 = vmatpush1.msra.mxu0 %v368
        %421 = vmatprep.subr.mxu0 0.0
        %422 = vmatpush1.msra.mxu0 %v367
        %423 = vmatprep.subr.mxu0 0.0
        %424 = vmatpush1.msra.mxu0 %v366
        %425 = vmatprep.subr.mxu0 0.0
        %426 = vmatpush1.msra.mxu0 %v365
        %427 = vmatprep.subr.mxu0 0.0
        %428 = vmatpush1.msra.mxu0 %v364
        %429 = vmatprep.subr.mxu0 0.0
        %430 = vmatpush1.msra.mxu0 %v363
        %431 = vmatprep.subr.mxu0 0.0
        %432 = vmatpush1.msra.mxu0 %v362
        %433 = vmatprep.subr.mxu0 0.0
        %434 = vmatpush1.msra.mxu0 %v361
        %435 = vmatprep.subr.mxu0 0.0
        %436 = vmatpush1.msra.mxu0 %v360
        %437 = vmatprep.subr.mxu0 0.0
        %438 = vmatpush1.msra.mxu0 %v359
        %439 = vmatprep.subr.mxu0 0.0
        %440 = vmatpush2.msra.mxu0 0.0
        %441 = vmatprep.subr.mxu0 0.0
        %442 = vmatpush2.msra.mxu0 0.0
        %443 = vmatprep.subr.mxu0 0.0
        %444 = vmatpush2.msra.mxu0 0.0
        %445 = vmatprep.subr.mxu0 0.0
        %446 = vmatpush2.msra.mxu0 0.0
        %447 = vmatprep.subr.mxu0 0.0
        %448 = vmatpush2.msra.mxu0 0.0
        %449 = vmatprep.subr.mxu0 0.0
        %450 = vmatpush2.msra.mxu0 0.0
        %451 = vmatprep.subr.mxu0 0.0
        %452 = vmatpush2.msra.mxu0 0.0
        %453 = vmatprep.subr.mxu0 0.0
        %454 = vmatpush2.msra.mxu0 0.0
        %455 = vmatprep.subr.mxu0 0.0
        %456 = vmatpush2.msra.mxu0 0.0
        %457 = vmatprep.subr.mxu0 0.0
        %458 = vmatpush2.msra.mxu0 0.0
        %459 = vmatprep.subr.mxu0 0.0
        %460 = vmatpush2.msra.mxu0 0.0
        %461 = vmatprep.subr.mxu0 0.0
        %462 = vmatpush2.msra.mxu0 0.0
        %463 = vmatprep.subr.mxu0 0.0
        %464 = vmatpush2.msra.mxu0 0.0
        %465 = vmatprep.subr.mxu0 0.0
        %466 = vmatpush2.msra.mxu0 0.0
        %467 = vmatprep.subr.mxu0 0.0
        %468 = vmatpush2.msra.mxu0 0.0
        %469 = vmatprep.subr.mxu0 0.0
        %470 = vmatpush2.msra.mxu0 0.0
        %471 = vmatprep.mubr.f32.mxu0 0.0
        %472 = vmatmul.mubr.f32.gmra.mxu0 %v353
        %v473 = vpop.f32.mrf.mxu0
        %v474 = vadd.f32 0.0, %v473
        %v475 = vpop.f32.mrf.mxu0
        %476 = vmatprep.mubr.f32.mxu0 0.0
        %477 = vmatmul.mubr.f32.gmra.mxu0 %v354
        %v478 = vpop.f32.mrf.mxu0
        %v479 = vadd.f32 0.0, %v478
        %v480 = vpop.f32.mrf.mxu0
        %481 = vdwg.mxu0
        %482 = vmatprep.subr.mxu0 0.0
        %483 = vmatpush1.msra.mxu0 %v390
        %484 = vmatprep.subr.mxu0 0.0
        %485 = vmatpush1.msra.mxu0 %v389
        %486 = vmatprep.subr.mxu0 0.0
        %487 = vmatpush1.msra.mxu0 %v388
        %488 = vmatprep.subr.mxu0 0.0
        %489 = vmatpush1.msra.mxu0 %v387
        %490 = vmatprep.subr.mxu0 0.0
        %491 = vmatpush1.msra.mxu0 %v386
        %492 = vmatprep.subr.mxu0 0.0
        %493 = vmatpush1.msra.mxu0 %v385
        %494 = vmatprep.subr.mxu0 0.0
        %495 = vmatpush1.msra.mxu0 %v384
        %496 = vmatprep.subr.mxu0 0.0
        %497 = vmatpush1.msra.mxu0 %v383
        %498 = vmatprep.subr.mxu0 0.0
        %499 = vmatpush1.msra.mxu0 %v382
        %500 = vmatprep.subr.mxu0 0.0
        %501 = vmatpush1.msra.mxu0 %v381
        %502 = vmatprep.subr.mxu0 0.0
        %503 = vmatpush1.msra.mxu0 %v380
        %504 = vmatprep.subr.mxu0 0.0
        %505 = vmatpush1.msra.mxu0 %v379
        %506 = vmatprep.subr.mxu0 0.0
        %507 = vmatpush1.msra.mxu0 %v378
        %508 = vmatprep.subr.mxu0 0.0
        %509 = vmatpush1.msra.mxu0 %v377
        %510 = vmatprep.subr.mxu0 0.0
        %511 = vmatpush1.msra.mxu0 %v376
        %512 = vmatprep.subr.mxu0 0.0
        %513 = vmatpush1.msra.mxu0 %v375
        %514 = vmatprep.subr.mxu0 0.0
        %515 = vmatpush2.msra.mxu0 0.0
        %516 = vmatprep.subr.mxu0 0.0
        %517 = vmatpush2.msra.mxu0 0.0
        %518 = vmatprep.subr.mxu0 0.0
        %519 = vmatpush2.msra.mxu0 0.0
        %520 = vmatprep.subr.mxu0 0.0
        %521 = vmatpush2.msra.mxu0 0.0
        %522 = vmatprep.subr.mxu0 0.0
        %523 = vmatpush2.msra.mxu0 0.0
        %524 = vmatprep.subr.mxu0 0.0
        %525 = vmatpush2.msra.mxu0 0.0
        %526 = vmatprep.subr.mxu0 0.0
        %527 = vmatpush2.msra.mxu0 0.0
        %528 = vmatprep.subr.mxu0 0.0
        %529 = vmatpush2.msra.mxu0 0.0
        %530 = vmatprep.subr.mxu0 0.0
        %531 = vmatpush2.msra.mxu0 0.0
        %532 = vmatprep.subr.mxu0 0.0
        %533 = vmatpush2.msra.mxu0 0.0
        %534 = vmatprep.subr.mxu0 0.0
        %535 = vmatpush2.msra.mxu0 0.0
        %536 = vmatprep.subr.mxu0 0.0
        %537 = vmatpush2.msra.mxu0 0.0
        %538 = vmatprep.subr.mxu0 0.0
        %539 = vmatpush2.msra.mxu0 0.0
        %540 = vmatprep.subr.mxu0 0.0
        %541 = vmatpush2.msra.mxu0 0.0
        %542 = vmatprep.subr.mxu0 0.0
        %543 = vmatpush2.msra.mxu0 0.0
        %544 = vmatprep.subr.mxu0 0.0
        %545 = vmatpush2.msra.mxu0 0.0
        %546 = vmatprep.mubr.f32.mxu0 0.0
        %547 = vmatmul.mubr.f32.gmra.mxu0 %v355
        %v548 = vpop.f32.mrf.mxu0
        %v549 = vadd.f32 0.0, %v548
        %v550 = vpop.f32.mrf.mxu0
        %551 = vmatprep.mubr.f32.mxu0 0.0
        %552 = vmatmul.mubr.f32.gmra.mxu0 %v356
        %v553 = vpop.f32.mrf.mxu0
        %v554 = vadd.f32 0.0, %v553
        %v555 = vpop.f32.mrf.mxu0
        %556 = vdwg.mxu0
        %557 = vmatprep.subr.mxu0 0.0
        %558 = vmatpush1.msra.mxu0 %v406
        %559 = vmatprep.subr.mxu0 0.0
        %560 = vmatpush1.msra.mxu0 %v405
        %561 = vmatprep.subr.mxu0 0.0
        %562 = vmatpush1.msra.mxu0 %v404
        %563 = vmatprep.subr.mxu0 0.0
        %564 = vmatpush1.msra.mxu0 %v403
        %565 = vmatprep.subr.mxu0 0.0
        %566 = vmatpush1.msra.mxu0 %v402
        %567 = vmatprep.subr.mxu0 0.0
        %568 = vmatpush1.msra.mxu0 %v401
        %569 = vmatprep.subr.mxu0 0.0
        %570 = vmatpush1.msra.mxu0 %v400
        %571 = vmatprep.subr.mxu0 0.0
        %572 = vmatpush1.msra.mxu0 %v399
        %573 = vmatprep.subr.mxu0 0.0
        %574 = vmatpush1.msra.mxu0 %v398
        %575 = vmatprep.subr.mxu0 0.0
        %576 = vmatpush1.msra.mxu0 %v397
        %577 = vmatprep.subr.mxu0 0.0
        %578 = vmatpush1.msra.mxu0 %v396
        %579 = vmatprep.subr.mxu0 0.0
        %580 = vmatpush1.msra.mxu0 %v395
        %581 = vmatprep.subr.mxu0 0.0
        %582 = vmatpush1.msra.mxu0 %v394
        %583 = vmatprep.subr.mxu0 0.0
        %584 = vmatpush1.msra.mxu0 %v393
        %585 = vmatprep.subr.mxu0 0.0
        %586 = vmatpush1.msra.mxu0 %v392
        %587 = vmatprep.subr.mxu0 0.0
        %588 = vmatpush1.msra.mxu0 %v391
        %589 = vmatprep.subr.mxu0 0.0
        %590 = vmatpush2.msra.mxu0 0.0
        %591 = vmatprep.subr.mxu0 0.0
        %592 = vmatpush2.msra.mxu0 0.0
        %593 = vmatprep.subr.mxu0 0.0
        %594 = vmatpush2.msra.mxu0 0.0
        %595 = vmatprep.subr.mxu0 0.0
        %596 = vmatpush2.msra.mxu0 0.0
        %597 = vmatprep.subr.mxu0 0.0
        %598 = vmatpush2.msra.mxu0 0.0
        %599 = vmatprep.subr.mxu0 0.0
        %600 = vmatpush2.msra.mxu0 0.0
        %601 = vmatprep.subr.mxu0 0.0
        %602 = vmatpush2.msra.mxu0 0.0
        %603 = vmatprep.subr.mxu0 0.0
        %604 = vmatpush2.msra.mxu0 0.0
        %605 = vmatprep.subr.mxu0 0.0
        %606 = vmatpush2.msra.mxu0 0.0
        %607 = vmatprep.subr.mxu0 0.0
        %608 = vmatpush2.msra.mxu0 0.0
        %609 = vmatprep.subr.mxu0 0.0
        %610 = vmatpush2.msra.mxu0 0.0
        %611 = vmatprep.subr.mxu0 0.0
        %612 = vmatpush2.msra.mxu0 0.0
        %613 = vmatprep.subr.mxu0 0.0
        %614 = vmatpush2.msra.mxu0 0.0
        %615 = vmatprep.subr.mxu0 0.0
        %616 = vmatpush2.msra.mxu0 0.0
        %617 = vmatprep.subr.mxu0 0.0
        %618 = vmatpush2.msra.mxu0 0.0
        %619 = vmatprep.subr.mxu0 0.0
        %620 = vmatpush2.msra.mxu0 0.0
        %621 = vmatprep.mubr.f32.mxu0 0.0
        %622 = vmatmul.mubr.f32.gmra.mxu0 %v357
        %v623 = vpop.f32.mrf.mxu0
        %v624 = vadd.f32 0.0, %v623
        %v625 = vpop.f32.mrf.mxu0
        %626 = vmatprep.mubr.f32.mxu0 0.0
        %627 = vmatmul.mubr.f32.gmra.mxu0 %v358
        %v628 = vpop.f32.mrf.mxu0
        %v629 = vadd.f32 0.0, %v628
        %v630 = vpop.f32.mrf.mxu0
        %631 = vdwg.mxu0
        %v632 = vld [vmem:[#allocation10] sm:$0xff]
        %v633 = vld [vmem:[#allocation10 + $0x8] sm:$0xff]
        %v634 = vld [vmem:[#allocation10 + $0x10] sm:$0xff]
        %v635 = vld [vmem:[#allocation10 + $0x18] sm:$0xff]
        %vm636 = vcmask 64512
        %v638 = vsel %vm636, %v474, 0
        %v641 = vsel %vm636, %v549, 0
        %643 = vmatprep.subr.mxu0 0.0
        %644 = vmatpush1.xpose.msra.mxu0 0.0
        %645 = vmatprep.subr.mxu0 0.0
        %646 = vmatpush1.xpose.msra.mxu0 0.0
        %647 = vmatprep.subr.mxu0 0.0
        %648 = vmatpush1.xpose.msra.mxu0 0.0
        %649 = vmatprep.subr.mxu0 0.0
        %650 = vmatpush1.xpose.msra.mxu0 0.0
        %651 = vmatprep.subr.mxu0 0.0
        %652 = vmatpush1.xpose.msra.mxu0 0.0
        %653 = vmatprep.subr.mxu0 0.0
        %654 = vmatpush1.xpose.msra.mxu0 0.0
        %655 = vmatprep.subr.mxu0 0.0
        %656 = vmatpush1.xpose.msra.mxu0 0.0
        %657 = vmatprep.subr.mxu0 0.0
        %658 = vmatpush1.xpose.msra.mxu0 0.0
        %659 = vmatprep.subr.mxu0 0.0
        %660 = vmatpush1.xpose.msra.mxu0 0.0
        %661 = vmatprep.subr.mxu0 0.0
        %662 = vmatpush1.xpose.msra.mxu0 0.0
        %663 = vmatprep.subr.mxu0 0.0
        %664 = vmatpush1.xpose.msra.mxu0 0.0
        %665 = vmatprep.subr.mxu0 0.0
        %666 = vmatpush1.xpose.msra.mxu0 0.0
        %667 = vmatprep.subr.mxu0 0.0
        %668 = vmatpush1.xpose.msra.mxu0 0.0
        %669 = vmatprep.subr.mxu0 0.0
        %670 = vmatpush1.xpose.msra.mxu0 0.0
        %671 = vmatprep.subr.mxu0 0.0
        %672 = vmatpush1.xpose.msra.mxu0 0.0
        %673 = vmatprep.subr.mxu0 0.0
        %674 = vmatpush1.xpose.msra.mxu0 %v641
        %675 = vmatprep.subr.mxu0 0.0
        %676 = vmatpush2.xpose.msra.mxu0 0.0
        %677 = vmatprep.subr.mxu0 0.0
        %678 = vmatpush2.xpose.msra.mxu0 0.0
        %679 = vmatprep.subr.mxu0 0.0
        %680 = vmatpush2.xpose.msra.mxu0 0.0
        %681 = vmatprep.subr.mxu0 0.0
        %682 = vmatpush2.xpose.msra.mxu0 0.0
        %683 = vmatprep.subr.mxu0 0.0
        %684 = vmatpush2.xpose.msra.mxu0 0.0
        %685 = vmatprep.subr.mxu0 0.0
        %686 = vmatpush2.xpose.msra.mxu0 0.0
        %687 = vmatprep.subr.mxu0 0.0
        %688 = vmatpush2.xpose.msra.mxu0 0.0
        %689 = vmatprep.subr.mxu0 0.0
        %690 = vmatpush2.xpose.msra.mxu0 0.0
        %691 = vmatprep.subr.mxu0 0.0
        %692 = vmatpush2.xpose.msra.mxu0 0.0
        %693 = vmatprep.subr.mxu0 0.0
        %694 = vmatpush2.xpose.msra.mxu0 0.0
        %695 = vmatprep.subr.mxu0 0.0
        %696 = vmatpush2.xpose.msra.mxu0 0.0
        %697 = vmatprep.subr.mxu0 0.0
        %698 = vmatpush2.xpose.msra.mxu0 0.0
        %699 = vmatprep.subr.mxu0 0.0
        %700 = vmatpush2.xpose.msra.mxu0 0.0
        %701 = vmatprep.subr.mxu0 0.0
        %702 = vmatpush2.xpose.msra.mxu0 0.0
        %703 = vmatprep.subr.mxu0 0.0
        %704 = vmatpush2.xpose.msra.mxu0 0.0
        %705 = vmatprep.subr.mxu0 0.0
        %706 = vmatpush2.xpose.msra.mxu0 0.0
        %707 = vmatprep.mubr.f32.mxu0 0.0
        %708 = vmatmul.mubr.f32.gmra.mxu0 %v638
        %v709 = vpop.f32.mrf.mxu0
        %v710 = vadd.f32 0.0, %v709
        %v711 = vpop.f32.mrf.mxu0
        %712 = vdwg.mxu0
        %v713 = vsel %vm636, %v710, -inf
        %714 = vmax.xlane.f32.xlu0 %v713
        %v715 = vpop.xlane.xlu0 %714
        %v716 = vsub.f32 %v710, %v715
        %v717 = vmul.f32 %v716, 1.442695
        %v718 = vpow.pop %v717
        %v719 = vsel %vm636, %v718, 0.0
        %720 = vadd.xlane.f32.xlu0 %v719
        %v721 = vpop.xlane.xlu0 %720
        %v722 = vrcp.pop %v721
        %v724 = vsel %vm636, %v718, 0
        %726 = vmatprep.subr.mxu0 0.0
        %727 = vmatpush1.msra.mxu0 0.0
        %728 = vmatprep.subr.mxu0 0.0
        %729 = vmatpush1.msra.mxu0 0.0
        %730 = vmatprep.subr.mxu0 0.0
        %731 = vmatpush1.msra.mxu0 0.0
        %732 = vmatprep.subr.mxu0 0.0
        %733 = vmatpush1.msra.mxu0 0.0
        %734 = vmatprep.subr.mxu0 0.0
        %735 = vmatpush1.msra.mxu0 0.0
        %736 = vmatprep.subr.mxu0 0.0
        %737 = vmatpush1.msra.mxu0 0.0
        %738 = vmatprep.subr.mxu0 0.0
        %739 = vmatpush1.msra.mxu0 0.0
        %740 = vmatprep.subr.mxu0 0.0
        %741 = vmatpush1.msra.mxu0 0.0
        %742 = vmatprep.subr.mxu0 0.0
        %743 = vmatpush1.msra.mxu0 0.0
        %744 = vmatprep.subr.mxu0 0.0
        %745 = vmatpush1.msra.mxu0 0.0
        %746 = vmatprep.subr.mxu0 0.0
        %747 = vmatpush1.msra.mxu0 0.0
        %748 = vmatprep.subr.mxu0 0.0
        %749 = vmatpush1.msra.mxu0 0.0
        %750 = vmatprep.subr.mxu0 0.0
        %751 = vmatpush1.msra.mxu0 0.0
        %752 = vmatprep.subr.mxu0 0.0
        %753 = vmatpush1.msra.mxu0 0.0
        %754 = vmatprep.subr.mxu0 0.0
        %755 = vmatpush1.msra.mxu0 0.0
        %756 = vmatprep.subr.mxu0 0.0
        %757 = vmatpush1.msra.mxu0 %v624
        %758 = vmatprep.subr.mxu0 0.0
        %759 = vmatpush2.msra.mxu0 0.0
        %760 = vmatprep.subr.mxu0 0.0
        %761 = vmatpush2.msra.mxu0 0.0
        %762 = vmatprep.subr.mxu0 0.0
        %763 = vmatpush2.msra.mxu0 0.0
        %764 = vmatprep.subr.mxu0 0.0
        %765 = vmatpush2.msra.mxu0 0.0
        %766 = vmatprep.subr.mxu0 0.0
        %767 = vmatpush2.msra.mxu0 0.0
        %768 = vmatprep.subr.mxu0 0.0
        %769 = vmatpush2.msra.mxu0 0.0
        %770 = vmatprep.subr.mxu0 0.0
        %771 = vmatpush2.msra.mxu0 0.0
        %772 = vmatprep.subr.mxu0 0.0
        %773 = vmatpush2.msra.mxu0 0.0
        %774 = vmatprep.subr.mxu0 0.0
        %775 = vmatpush2.msra.mxu0 0.0
        %776 = vmatprep.subr.mxu0 0.0
        %777 = vmatpush2.msra.mxu0 0.0
        %778 = vmatprep.subr.mxu0 0.0
        %779 = vmatpush2.msra.mxu0 0.0
        %780 = vmatprep.subr.mxu0 0.0
        %781 = vmatpush2.msra.mxu0 0.0
        %782 = vmatprep.subr.mxu0 0.0
        %783 = vmatpush2.msra.mxu0 0.0
        %784 = vmatprep.subr.mxu0 0.0
        %785 = vmatpush2.msra.mxu0 0.0
        %786 = vmatprep.subr.mxu0 0.0
        %787 = vmatpush2.msra.mxu0 0.0
        %788 = vmatprep.subr.mxu0 0.0
        %789 = vmatpush2.msra.mxu0 0.0
        %790 = vmatprep.mubr.f32.mxu0 0.0
        %791 = vmatmul.mubr.f32.gmra.mxu0 %v724
        %v792 = vpop.f32.mrf.mxu0
        %v793 = vadd.f32 0.0, %v792
        %v794 = vpop.f32.mrf.mxu0
        %795 = vdwg.mxu0
        %v796 = vmul.f32 %v793, %v722
        %797 = vrot.lane.b32.xlu0 %v474, 120
        %v798 = vpop.permute.xlu0 %797
        %799 = vrot.lane.b32.xlu0 %v549, 120
        %v800 = vpop.permute.xlu0 %799
        %v801 = vsel %vm636, %v798, 0
        %v803 = vsel %vm636, %v800, 0
        %805 = vmatprep.subr.mxu0 0.0
        %806 = vmatpush1.xpose.msra.mxu0 0.0
        %807 = vmatprep.subr.mxu0 0.0
        %808 = vmatpush1.xpose.msra.mxu0 0.0
        %809 = vmatprep.subr.mxu0 0.0
        %810 = vmatpush1.xpose.msra.mxu0 0.0
        %811 = vmatprep.subr.mxu0 0.0
        %812 = vmatpush1.xpose.msra.mxu0 0.0
        %813 = vmatprep.subr.mxu0 0.0
        %814 = vmatpush1.xpose.msra.mxu0 0.0
        %815 = vmatprep.subr.mxu0 0.0
        %816 = vmatpush1.xpose.msra.mxu0 0.0
        %817 = vmatprep.subr.mxu0 0.0
        %818 = vmatpush1.xpose.msra.mxu0 0.0
        %819 = vmatprep.subr.mxu0 0.0
        %820 = vmatpush1.xpose.msra.mxu0 0.0
        %821 = vmatprep.subr.mxu0 0.0
        %822 = vmatpush1.xpose.msra.mxu0 0.0
        %823 = vmatprep.subr.mxu0 0.0
        %824 = vmatpush1.xpose.msra.mxu0 0.0
        %825 = vmatprep.subr.mxu0 0.0
        %826 = vmatpush1.xpose.msra.mxu0 0.0
        %827 = vmatprep.subr.mxu0 0.0
        %828 = vmatpush1.xpose.msra.mxu0 0.0
        %829 = vmatprep.subr.mxu0 0.0
        %830 = vmatpush1.xpose.msra.mxu0 0.0
        %831 = vmatprep.subr.mxu0 0.0
        %832 = vmatpush1.xpose.msra.mxu0 0.0
        %833 = vmatprep.subr.mxu0 0.0
        %834 = vmatpush1.xpose.msra.mxu0 0.0
        %835 = vmatprep.subr.mxu0 0.0
        %836 = vmatpush1.xpose.msra.mxu0 %v803
        %837 = vmatprep.subr.mxu0 0.0
        %838 = vmatpush2.xpose.msra.mxu0 0.0
        %839 = vmatprep.subr.mxu0 0.0
        %840 = vmatpush2.xpose.msra.mxu0 0.0
        %841 = vmatprep.subr.mxu0 0.0
        %842 = vmatpush2.xpose.msra.mxu0 0.0
        %843 = vmatprep.subr.mxu0 0.0
        %844 = vmatpush2.xpose.msra.mxu0 0.0
        %845 = vmatprep.subr.mxu0 0.0
        %846 = vmatpush2.xpose.msra.mxu0 0.0
        %847 = vmatprep.subr.mxu0 0.0
        %848 = vmatpush2.xpose.msra.mxu0 0.0
        %849 = vmatprep.subr.mxu0 0.0
        %850 = vmatpush2.xpose.msra.mxu0 0.0
        %851 = vmatprep.subr.mxu0 0.0
        %852 = vmatpush2.xpose.msra.mxu0 0.0
        %853 = vmatprep.subr.mxu0 0.0
        %854 = vmatpush2.xpose.msra.mxu0 0.0
        %855 = vmatprep.subr.mxu0 0.0
        %856 = vmatpush2.xpose.msra.mxu0 0.0
        %857 = vmatprep.subr.mxu0 0.0
        %858 = vmatpush2.xpose.msra.mxu0 0.0
        %859 = vmatprep.subr.mxu0 0.0
        %860 = vmatpush2.xpose.msra.mxu0 0.0
        %861 = vmatprep.subr.mxu0 0.0
        %862 = vmatpush2.xpose.msra.mxu0 0.0
        %863 = vmatprep.subr.mxu0 0.0
        %864 = vmatpush2.xpose.msra.mxu0 0.0
        %865 = vmatprep.subr.mxu0 0.0
        %866 = vmatpush2.xpose.msra.mxu0 0.0
        %867 = vmatprep.subr.mxu0 0.0
        %868 = vmatpush2.xpose.msra.mxu0 0.0
        %869 = vmatprep.mubr.f32.mxu0 0.0
        %870 = vmatmul.mubr.f32.gmra.mxu0 %v801
        %v871 = vpop.f32.mrf.mxu0
        %v872 = vadd.f32 0.0, %v871
        %v873 = vpop.f32.mrf.mxu0
        %874 = vdwg.mxu0
        %v875 = vsel %vm636, %v872, -inf
        %876 = vmax.xlane.f32.xlu0 %v875
        %v877 = vpop.xlane.xlu0 %876
        %v878 = vsub.f32 %v872, %v877
        %v879 = vmul.f32 %v878, 1.442695
        %v880 = vpow.pop %v879
        %v881 = vsel %vm636, %v880, 0.0
        %882 = vadd.xlane.f32.xlu0 %v881
        %v883 = vpop.xlane.xlu0 %882
        %v884 = vrcp.pop %v883
        %886 = vrot.lane.b32.xlu0 %v624, 120
        %v887 = vpop.permute.xlu0 %886
        %v890 = vsel %vm636, %v880, 0
        %892 = vmatprep.subr.mxu0 0.0
        %893 = vmatpush1.msra.mxu0 0.0
        %894 = vmatprep.subr.mxu0 0.0
        %895 = vmatpush1.msra.mxu0 0.0
        %896 = vmatprep.subr.mxu0 0.0
        %897 = vmatpush1.msra.mxu0 0.0
        %898 = vmatprep.subr.mxu0 0.0
        %899 = vmatpush1.msra.mxu0 0.0
        %900 = vmatprep.subr.mxu0 0.0
        %901 = vmatpush1.msra.mxu0 0.0
        %902 = vmatprep.subr.mxu0 0.0
        %903 = vmatpush1.msra.mxu0 0.0
        %904 = vmatprep.subr.mxu0 0.0
        %905 = vmatpush1.msra.mxu0 0.0
        %906 = vmatprep.subr.mxu0 0.0
        %907 = vmatpush1.msra.mxu0 0.0
        %908 = vmatprep.subr.mxu0 0.0
        %909 = vmatpush1.msra.mxu0 0.0
        %910 = vmatprep.subr.mxu0 0.0
        %911 = vmatpush1.msra.mxu0 0.0
        %912 = vmatprep.subr.mxu0 0.0
        %913 = vmatpush1.msra.mxu0 0.0
        %914 = vmatprep.subr.mxu0 0.0
        %915 = vmatpush1.msra.mxu0 0.0
        %916 = vmatprep.subr.mxu0 0.0
        %917 = vmatpush1.msra.mxu0 0.0
        %918 = vmatprep.subr.mxu0 0.0
        %919 = vmatpush1.msra.mxu0 0.0
        %920 = vmatprep.subr.mxu0 0.0
        %921 = vmatpush1.msra.mxu0 0.0
        %922 = vmatprep.subr.mxu0 0.0
        %923 = vmatpush1.msra.mxu0 %v887
        %924 = vmatprep.subr.mxu0 0.0
        %925 = vmatpush2.msra.mxu0 0.0
        %926 = vmatprep.subr.mxu0 0.0
        %927 = vmatpush2.msra.mxu0 0.0
        %928 = vmatprep.subr.mxu0 0.0
        %929 = vmatpush2.msra.mxu0 0.0
        %930 = vmatprep.subr.mxu0 0.0
        %931 = vmatpush2.msra.mxu0 0.0
        %932 = vmatprep.subr.mxu0 0.0
        %933 = vmatpush2.msra.mxu0 0.0
        %934 = vmatprep.subr.mxu0 0.0
        %935 = vmatpush2.msra.mxu0 0.0
        %936 = vmatprep.subr.mxu0 0.0
        %937 = vmatpush2.msra.mxu0 0.0
        %938 = vmatprep.subr.mxu0 0.0
        %939 = vmatpush2.msra.mxu0 0.0
        %940 = vmatprep.subr.mxu0 0.0
        %941 = vmatpush2.msra.mxu0 0.0
        %942 = vmatprep.subr.mxu0 0.0
        %943 = vmatpush2.msra.mxu0 0.0
        %944 = vmatprep.subr.mxu0 0.0
        %945 = vmatpush2.msra.mxu0 0.0
        %946 = vmatprep.subr.mxu0 0.0
        %947 = vmatpush2.msra.mxu0 0.0
        %948 = vmatprep.subr.mxu0 0.0
        %949 = vmatpush2.msra.mxu0 0.0
        %950 = vmatprep.subr.mxu0 0.0
        %951 = vmatpush2.msra.mxu0 0.0
        %952 = vmatprep.subr.mxu0 0.0
        %953 = vmatpush2.msra.mxu0 0.0
        %954 = vmatprep.subr.mxu0 0.0
        %955 = vmatpush2.msra.mxu0 0.0
        %956 = vmatprep.mubr.f32.mxu0 0.0
        %957 = vmatmul.mubr.f32.gmra.mxu0 %v890
        %v958 = vpop.f32.mrf.mxu0
        %v959 = vadd.f32 0.0, %v958
        %v960 = vpop.f32.mrf.mxu0
        %961 = vdwg.mxu0
        %v962 = vmul.f32 %v959, %v884
        %v964 = vsel %vm636, %v962, 0
        %966 = vmatprep.subr.mxu0 0.0
        %967 = vmatpush1.msra.mxu0 0.0
        %968 = vmatprep.subr.mxu0 0.0
        %969 = vmatpush1.msra.mxu0 0.0
        %970 = vmatprep.subr.mxu0 0.0
        %971 = vmatpush1.msra.mxu0 0.0
        %972 = vmatprep.subr.mxu0 0.0
        %973 = vmatpush1.msra.mxu0 0.0
        %974 = vmatprep.subr.mxu0 0.0
        %975 = vmatpush1.msra.mxu0 0.0
        %976 = vmatprep.subr.mxu0 0.0
        %977 = vmatpush1.msra.mxu0 0.0
        %978 = vmatprep.subr.mxu0 0.0
        %979 = vmatpush1.msra.mxu0 0.0
        %980 = vmatprep.subr.mxu0 0.0
        %981 = vmatpush1.msra.mxu0 0.0
        %982 = vmatprep.subr.mxu0 0.0
        %983 = vmatpush1.msra.mxu0 0.0
        %984 = vmatprep.subr.mxu0 0.0
        %985 = vmatpush1.msra.mxu0 0.0
        %986 = vmatprep.subr.mxu0 0.0
        %987 = vmatpush1.msra.mxu0 0.0
        %988 = vmatprep.subr.mxu0 0.0
        %989 = vmatpush1.msra.mxu0 0.0
        %990 = vmatprep.subr.mxu0 0.0
        %991 = vmatpush1.msra.mxu0 0.0
        %992 = vmatprep.subr.mxu0 0.0
        %993 = vmatpush1.msra.mxu0 0.0
        %994 = vmatprep.subr.mxu0 0.0
        %995 = vmatpush1.msra.mxu0 0.0
        %996 = vmatprep.subr.mxu0 0.0
        %997 = vmatpush1.msra.mxu0 %v633
        %998 = vmatprep.subr.mxu0 0.0
        %999 = vmatpush2.msra.mxu0 0.0
        %1000 = vmatprep.subr.mxu0 0.0
        %1001 = vmatpush2.msra.mxu0 0.0
        %1002 = vmatprep.subr.mxu0 0.0
        %1003 = vmatpush2.msra.mxu0 0.0
        %1004 = vmatprep.subr.mxu0 0.0
        %1005 = vmatpush2.msra.mxu0 0.0
        %1006 = vmatprep.subr.mxu0 0.0
        %1007 = vmatpush2.msra.mxu0 0.0
        %1008 = vmatprep.subr.mxu0 0.0
        %1009 = vmatpush2.msra.mxu0 0.0
        %1010 = vmatprep.subr.mxu0 0.0
        %1011 = vmatpush2.msra.mxu0 0.0
        %1012 = vmatprep.subr.mxu0 0.0
        %1013 = vmatpush2.msra.mxu0 0.0
        %1014 = vmatprep.subr.mxu0 0.0
        %1015 = vmatpush2.msra.mxu0 0.0
        %1016 = vmatprep.subr.mxu0 0.0
        %1017 = vmatpush2.msra.mxu0 0.0
        %1018 = vmatprep.subr.mxu0 0.0
        %1019 = vmatpush2.msra.mxu0 0.0
        %1020 = vmatprep.subr.mxu0 0.0
        %1021 = vmatpush2.msra.mxu0 0.0
        %1022 = vmatprep.subr.mxu0 0.0
        %1023 = vmatpush2.msra.mxu0 0.0
        %1024 = vmatprep.subr.mxu0 0.0
        %1025 = vmatpush2.msra.mxu0 0.0
        %1026 = vmatprep.subr.mxu0 0.0
        %1027 = vmatpush2.msra.mxu0 0.0
        %1028 = vmatprep.subr.mxu0 0.0
        %1029 = vmatpush2.msra.mxu0 0.0
        %1030 = vmatprep.mubr.f32.mxu0 0.0
        %1031 = vmatmul.mubr.f32.gmra.mxu0 %v964
        %v1032 = vpop.f32.mrf.mxu0
        %v1033 = vadd.f32 0.0, %v1032
        %v1034 = vpop.f32.mrf.mxu0
        %1035 = vdwg.mxu0
        %v1037 = vsel %vm636, %v796, 0
        %1039 = vmatprep.subr.mxu0 0.0
        %1040 = vmatpush1.msra.mxu0 0.0
        %1041 = vmatprep.subr.mxu0 0.0
        %1042 = vmatpush1.msra.mxu0 0.0
        %1043 = vmatprep.subr.mxu0 0.0
        %1044 = vmatpush1.msra.mxu0 0.0
        %1045 = vmatprep.subr.mxu0 0.0
        %1046 = vmatpush1.msra.mxu0 0.0
        %1047 = vmatprep.subr.mxu0 0.0
        %1048 = vmatpush1.msra.mxu0 0.0
        %1049 = vmatprep.subr.mxu0 0.0
        %1050 = vmatpush1.msra.mxu0 0.0
        %1051 = vmatprep.subr.mxu0 0.0
        %1052 = vmatpush1.msra.mxu0 0.0
        %1053 = vmatprep.subr.mxu0 0.0
        %1054 = vmatpush1.msra.mxu0 0.0
        %1055 = vmatprep.subr.mxu0 0.0
        %1056 = vmatpush1.msra.mxu0 0.0
        %1057 = vmatprep.subr.mxu0 0.0
        %1058 = vmatpush1.msra.mxu0 0.0
        %1059 = vmatprep.subr.mxu0 0.0
        %1060 = vmatpush1.msra.mxu0 0.0
        %1061 = vmatprep.subr.mxu0 0.0
        %1062 = vmatpush1.msra.mxu0 0.0
        %1063 = vmatprep.subr.mxu0 0.0
        %1064 = vmatpush1.msra.mxu0 0.0
        %1065 = vmatprep.subr.mxu0 0.0
        %1066 = vmatpush1.msra.mxu0 0.0
        %1067 = vmatprep.subr.mxu0 0.0
        %1068 = vmatpush1.msra.mxu0 0.0
        %1069 = vmatprep.subr.mxu0 0.0
        %1070 = vmatpush1.msra.mxu0 %v632
        %1071 = vmatprep.subr.mxu0 0.0
        %1072 = vmatpush2.msra.mxu0 0.0
        %1073 = vmatprep.subr.mxu0 0.0
        %1074 = vmatpush2.msra.mxu0 0.0
        %1075 = vmatprep.subr.mxu0 0.0
        %1076 = vmatpush2.msra.mxu0 0.0
        %1077 = vmatprep.subr.mxu0 0.0
        %1078 = vmatpush2.msra.mxu0 0.0
        %1079 = vmatprep.subr.mxu0 0.0
        %1080 = vmatpush2.msra.mxu0 0.0
        %1081 = vmatprep.subr.mxu0 0.0
        %1082 = vmatpush2.msra.mxu0 0.0
        %1083 = vmatprep.subr.mxu0 0.0
        %1084 = vmatpush2.msra.mxu0 0.0
        %1085 = vmatprep.subr.mxu0 0.0
        %1086 = vmatpush2.msra.mxu0 0.0
        %1087 = vmatprep.subr.mxu0 0.0
        %1088 = vmatpush2.msra.mxu0 0.0
        %1089 = vmatprep.subr.mxu0 0.0
        %1090 = vmatpush2.msra.mxu0 0.0
        %1091 = vmatprep.subr.mxu0 0.0
        %1092 = vmatpush2.msra.mxu0 0.0
        %1093 = vmatprep.subr.mxu0 0.0
        %1094 = vmatpush2.msra.mxu0 0.0
        %1095 = vmatprep.subr.mxu0 0.0
        %1096 = vmatpush2.msra.mxu0 0.0
        %1097 = vmatprep.subr.mxu0 0.0
        %1098 = vmatpush2.msra.mxu0 0.0
        %1099 = vmatprep.subr.mxu0 0.0
        %1100 = vmatpush2.msra.mxu0 0.0
        %1101 = vmatprep.subr.mxu0 0.0
        %1102 = vmatpush2.msra.mxu0 0.0
        %1103 = vmatprep.mubr.f32.mxu0 0.0
        %1104 = vmatmul.mubr.f32.gmra.mxu0 %v1037
        %v1105 = vpop.f32.mrf.mxu0
        %v1106 = vadd.f32 %v1033, %v1105
        %v1107 = vpop.f32.mrf.mxu0
        %1108 = vdwg.mxu0
        %1109 = vrot.lane.b32.xlu0 %v474, 112
        %v1110 = vpop.permute.xlu0 %1109
        %1111 = vrot.lane.b32.xlu0 %v549, 112
        %v1112 = vpop.permute.xlu0 %1111
        %v1113 = vsel %vm636, %v1110, 0
        %v1115 = vsel %vm636, %v1112, 0
        %1117 = vmatprep.subr.mxu0 0.0
        %1118 = vmatpush1.xpose.msra.mxu0 0.0
        %1119 = vmatprep.subr.mxu0 0.0
        %1120 = vmatpush1.xpose.msra.mxu0 0.0
        %1121 = vmatprep.subr.mxu0 0.0
        %1122 = vmatpush1.xpose.msra.mxu0 0.0
        %1123 = vmatprep.subr.mxu0 0.0
        %1124 = vmatpush1.xpose.msra.mxu0 0.0
        %1125 = vmatprep.subr.mxu0 0.0
        %1126 = vmatpush1.xpose.msra.mxu0 0.0
        %1127 = vmatprep.subr.mxu0 0.0
        %1128 = vmatpush1.xpose.msra.mxu0 0.0
        %1129 = vmatprep.subr.mxu0 0.0
        %1130 = vmatpush1.xpose.msra.mxu0 0.0
        %1131 = vmatprep.subr.mxu0 0.0
        %1132 = vmatpush1.xpose.msra.mxu0 0.0
        %1133 = vmatprep.subr.mxu0 0.0
        %1134 = vmatpush1.xpose.msra.mxu0 0.0
        %1135 = vmatprep.subr.mxu0 0.0
        %1136 = vmatpush1.xpose.msra.mxu0 0.0
        %1137 = vmatprep.subr.mxu0 0.0
        %1138 = vmatpush1.xpose.msra.mxu0 0.0
        %1139 = vmatprep.subr.mxu0 0.0
        %1140 = vmatpush1.xpose.msra.mxu0 0.0
        %1141 = vmatprep.subr.mxu0 0.0
        %1142 = vmatpush1.xpose.msra.mxu0 0.0
        %1143 = vmatprep.subr.mxu0 0.0
        %1144 = vmatpush1.xpose.msra.mxu0 0.0
        %1145 = vmatprep.subr.mxu0 0.0
        %1146 = vmatpush1.xpose.msra.mxu0 0.0
        %1147 = vmatprep.subr.mxu0 0.0
        %1148 = vmatpush1.xpose.msra.mxu0 %v1115
        %1149 = vmatprep.subr.mxu0 0.0
        %1150 = vmatpush2.xpose.msra.mxu0 0.0
        %1151 = vmatprep.subr.mxu0 0.0
        %1152 = vmatpush2.xpose.msra.mxu0 0.0
        %1153 = vmatprep.subr.mxu0 0.0
        %1154 = vmatpush2.xpose.msra.mxu0 0.0
        %1155 = vmatprep.subr.mxu0 0.0
        %1156 = vmatpush2.xpose.msra.mxu0 0.0
        %1157 = vmatprep.subr.mxu0 0.0
        %1158 = vmatpush2.xpose.msra.mxu0 0.0
        %1159 = vmatprep.subr.mxu0 0.0
        %1160 = vmatpush2.xpose.msra.mxu0 0.0
        %1161 = vmatprep.subr.mxu0 0.0
        %1162 = vmatpush2.xpose.msra.mxu0 0.0
        %1163 = vmatprep.subr.mxu0 0.0
        %1164 = vmatpush2.xpose.msra.mxu0 0.0
        %1165 = vmatprep.subr.mxu0 0.0
        %1166 = vmatpush2.xpose.msra.mxu0 0.0
        %1167 = vmatprep.subr.mxu0 0.0
        %1168 = vmatpush2.xpose.msra.mxu0 0.0
        %1169 = vmatprep.subr.mxu0 0.0
        %1170 = vmatpush2.xpose.msra.mxu0 0.0
        %1171 = vmatprep.subr.mxu0 0.0
        %1172 = vmatpush2.xpose.msra.mxu0 0.0
        %1173 = vmatprep.subr.mxu0 0.0
        %1174 = vmatpush2.xpose.msra.mxu0 0.0
        %1175 = vmatprep.subr.mxu0 0.0
        %1176 = vmatpush2.xpose.msra.mxu0 0.0
        %1177 = vmatprep.subr.mxu0 0.0
        %1178 = vmatpush2.xpose.msra.mxu0 0.0
        %1179 = vmatprep.subr.mxu0 0.0
        %1180 = vmatpush2.xpose.msra.mxu0 0.0
        %1181 = vmatprep.mubr.f32.mxu0 0.0
        %1182 = vmatmul.mubr.f32.gmra.mxu0 %v1113
        %v1183 = vpop.f32.mrf.mxu0
        %v1184 = vadd.f32 0.0, %v1183
        %v1185 = vpop.f32.mrf.mxu0
        %1186 = vdwg.mxu0
        %v1187 = vsel %vm636, %v1184, -inf
        %1188 = vmax.xlane.f32.xlu0 %v1187
        %v1189 = vpop.xlane.xlu0 %1188
        %v1190 = vsub.f32 %v1184, %v1189
        %v1191 = vmul.f32 %v1190, 1.442695
        %v1192 = vpow.pop %v1191
        %v1193 = vsel %vm636, %v1192, 0.0
        %1194 = vadd.xlane.f32.xlu0 %v1193
        %v1195 = vpop.xlane.xlu0 %1194
        %v1196 = vrcp.pop %v1195
        %1197 = vrot.lane.b32.xlu0 %v624, 112
        %v1198 = vpop.permute.xlu0 %1197
        %v1201 = vsel %vm636, %v1192, 0
        %1203 = vmatprep.subr.mxu0 0.0
        %1204 = vmatpush1.msra.mxu0 0.0
        %1205 = vmatprep.subr.mxu0 0.0
        %1206 = vmatpush1.msra.mxu0 0.0
        %1207 = vmatprep.subr.mxu0 0.0
        %1208 = vmatpush1.msra.mxu0 0.0
        %1209 = vmatprep.subr.mxu0 0.0
        %1210 = vmatpush1.msra.mxu0 0.0
        %1211 = vmatprep.subr.mxu0 0.0
        %1212 = vmatpush1.msra.mxu0 0.0
        %1213 = vmatprep.subr.mxu0 0.0
        %1214 = vmatpush1.msra.mxu0 0.0
        %1215 = vmatprep.subr.mxu0 0.0
        %1216 = vmatpush1.msra.mxu0 0.0
        %1217 = vmatprep.subr.mxu0 0.0
        %1218 = vmatpush1.msra.mxu0 0.0
        %1219 = vmatprep.subr.mxu0 0.0
        %1220 = vmatpush1.msra.mxu0 0.0
        %1221 = vmatprep.subr.mxu0 0.0
        %1222 = vmatpush1.msra.mxu0 0.0
        %1223 = vmatprep.subr.mxu0 0.0
        %1224 = vmatpush1.msra.mxu0 0.0
        %1225 = vmatprep.subr.mxu0 0.0
        %1226 = vmatpush1.msra.mxu0 0.0
        %1227 = vmatprep.subr.mxu0 0.0
        %1228 = vmatpush1.msra.mxu0 0.0
        %1229 = vmatprep.subr.mxu0 0.0
        %1230 = vmatpush1.msra.mxu0 0.0
        %1231 = vmatprep.subr.mxu0 0.0
        %1232 = vmatpush1.msra.mxu0 0.0
        %1233 = vmatprep.subr.mxu0 0.0
        %1234 = vmatpush1.msra.mxu0 %v1198
        %1235 = vmatprep.subr.mxu0 0.0
        %1236 = vmatpush2.msra.mxu0 0.0
        %1237 = vmatprep.subr.mxu0 0.0
        %1238 = vmatpush2.msra.mxu0 0.0
        %1239 = vmatprep.subr.mxu0 0.0
        %1240 = vmatpush2.msra.mxu0 0.0
        %1241 = vmatprep.subr.mxu0 0.0
        %1242 = vmatpush2.msra.mxu0 0.0
        %1243 = vmatprep.subr.mxu0 0.0
        %1244 = vmatpush2.msra.mxu0 0.0
        %1245 = vmatprep.subr.mxu0 0.0
        %1246 = vmatpush2.msra.mxu0 0.0
        %1247 = vmatprep.subr.mxu0 0.0
        %1248 = vmatpush2.msra.mxu0 0.0
        %1249 = vmatprep.subr.mxu0 0.0
        %1250 = vmatpush2.msra.mxu0 0.0
        %1251 = vmatprep.subr.mxu0 0.0
        %1252 = vmatpush2.msra.mxu0 0.0
        %1253 = vmatprep.subr.mxu0 0.0
        %1254 = vmatpush2.msra.mxu0 0.0
        %1255 = vmatprep.subr.mxu0 0.0
        %1256 = vmatpush2.msra.mxu0 0.0
        %1257 = vmatprep.subr.mxu0 0.0
        %1258 = vmatpush2.msra.mxu0 0.0
        %1259 = vmatprep.subr.mxu0 0.0
        %1260 = vmatpush2.msra.mxu0 0.0
        %1261 = vmatprep.subr.mxu0 0.0
        %1262 = vmatpush2.msra.mxu0 0.0
        %1263 = vmatprep.subr.mxu0 0.0
        %1264 = vmatpush2.msra.mxu0 0.0
        %1265 = vmatprep.subr.mxu0 0.0
        %1266 = vmatpush2.msra.mxu0 0.0
        %1267 = vmatprep.mubr.f32.mxu0 0.0
        %1268 = vmatmul.mubr.f32.gmra.mxu0 %v1201
        %v1269 = vpop.f32.mrf.mxu0
        %v1270 = vadd.f32 0.0, %v1269
        %v1271 = vpop.f32.mrf.mxu0
        %1272 = vdwg.mxu0
        %v1273 = vmul.f32 %v1270, %v1196
        %v1275 = vsel %vm636, %v1273, 0
        %1277 = vmatprep.subr.mxu0 0.0
        %1278 = vmatpush1.msra.mxu0 0.0
        %1279 = vmatprep.subr.mxu0 0.0
        %1280 = vmatpush1.msra.mxu0 0.0
        %1281 = vmatprep.subr.mxu0 0.0
        %1282 = vmatpush1.msra.mxu0 0.0
        %1283 = vmatprep.subr.mxu0 0.0
        %1284 = vmatpush1.msra.mxu0 0.0
        %1285 = vmatprep.subr.mxu0 0.0
        %1286 = vmatpush1.msra.mxu0 0.0
        %1287 = vmatprep.subr.mxu0 0.0
        %1288 = vmatpush1.msra.mxu0 0.0
        %1289 = vmatprep.subr.mxu0 0.0
        %1290 = vmatpush1.msra.mxu0 0.0
        %1291 = vmatprep.subr.mxu0 0.0
        %1292 = vmatpush1.msra.mxu0 0.0
        %1293 = vmatprep.subr.mxu0 0.0
        %1294 = vmatpush1.msra.mxu0 0.0
        %1295 = vmatprep.subr.mxu0 0.0
        %1296 = vmatpush1.msra.mxu0 0.0
        %1297 = vmatprep.subr.mxu0 0.0
        %1298 = vmatpush1.msra.mxu0 0.0
        %1299 = vmatprep.subr.mxu0 0.0
        %1300 = vmatpush1.msra.mxu0 0.0
        %1301 = vmatprep.subr.mxu0 0.0
        %1302 = vmatpush1.msra.mxu0 0.0
        %1303 = vmatprep.subr.mxu0 0.0
        %1304 = vmatpush1.msra.mxu0 0.0
        %1305 = vmatprep.subr.mxu0 0.0
        %1306 = vmatpush1.msra.mxu0 0.0
        %1307 = vmatprep.subr.mxu0 0.0
        %1308 = vmatpush1.msra.mxu0 %v634
        %1309 = vmatprep.subr.mxu0 0.0
        %1310 = vmatpush2.msra.mxu0 0.0
        %1311 = vmatprep.subr.mxu0 0.0
        %1312 = vmatpush2.msra.mxu0 0.0
        %1313 = vmatprep.subr.mxu0 0.0
        %1314 = vmatpush2.msra.mxu0 0.0
        %1315 = vmatprep.subr.mxu0 0.0
        %1316 = vmatpush2.msra.mxu0 0.0
        %1317 = vmatprep.subr.mxu0 0.0
        %1318 = vmatpush2.msra.mxu0 0.0
        %1319 = vmatprep.subr.mxu0 0.0
        %1320 = vmatpush2.msra.mxu0 0.0
        %1321 = vmatprep.subr.mxu0 0.0
        %1322 = vmatpush2.msra.mxu0 0.0
        %1323 = vmatprep.subr.mxu0 0.0
        %1324 = vmatpush2.msra.mxu0 0.0
        %1325 = vmatprep.subr.mxu0 0.0
        %1326 = vmatpush2.msra.mxu0 0.0
        %1327 = vmatprep.subr.mxu0 0.0
        %1328 = vmatpush2.msra.mxu0 0.0
        %1329 = vmatprep.subr.mxu0 0.0
        %1330 = vmatpush2.msra.mxu0 0.0
        %1331 = vmatprep.subr.mxu0 0.0
        %1332 = vmatpush2.msra.mxu0 0.0
        %1333 = vmatprep.subr.mxu0 0.0
        %1334 = vmatpush2.msra.mxu0 0.0
        %1335 = vmatprep.subr.mxu0 0.0
        %1336 = vmatpush2.msra.mxu0 0.0
        %1337 = vmatprep.subr.mxu0 0.0
        %1338 = vmatpush2.msra.mxu0 0.0
        %1339 = vmatprep.subr.mxu0 0.0
        %1340 = vmatpush2.msra.mxu0 0.0
        %1341 = vmatprep.mubr.f32.mxu0 0.0
        %1342 = vmatmul.mubr.f32.gmra.mxu0 %v1275
        %v1343 = vpop.f32.mrf.mxu0
        %v1344 = vadd.f32 0.0, %v1343
        %v1345 = vpop.f32.mrf.mxu0
        %1346 = vdwg.mxu0
        %v1347 = vadd.f32 %v1106, %v1344
        %1348 = vrot.lane.b32.xlu0 %v474, 104
        %v1349 = vpop.permute.xlu0 %1348
        %1350 = vrot.lane.b32.xlu0 %v549, 104
        %v1351 = vpop.permute.xlu0 %1350
        %v1352 = vsel %vm636, %v1349, 0
        %v1354 = vsel %vm636, %v1351, 0
        %1356 = vmatprep.subr.mxu0 0.0
        %1357 = vmatpush1.xpose.msra.mxu0 0.0
        %1358 = vmatprep.subr.mxu0 0.0
        %1359 = vmatpush1.xpose.msra.mxu0 0.0
        %1360 = vmatprep.subr.mxu0 0.0
        %1361 = vmatpush1.xpose.msra.mxu0 0.0
        %1362 = vmatprep.subr.mxu0 0.0
        %1363 = vmatpush1.xpose.msra.mxu0 0.0
        %1364 = vmatprep.subr.mxu0 0.0
        %1365 = vmatpush1.xpose.msra.mxu0 0.0
        %1366 = vmatprep.subr.mxu0 0.0
        %1367 = vmatpush1.xpose.msra.mxu0 0.0
        %1368 = vmatprep.subr.mxu0 0.0
        %1369 = vmatpush1.xpose.msra.mxu0 0.0
        %1370 = vmatprep.subr.mxu0 0.0
        %1371 = vmatpush1.xpose.msra.mxu0 0.0
        %1372 = vmatprep.subr.mxu0 0.0
        %1373 = vmatpush1.xpose.msra.mxu0 0.0
        %1374 = vmatprep.subr.mxu0 0.0
        %1375 = vmatpush1.xpose.msra.mxu0 0.0
        %1376 = vmatprep.subr.mxu0 0.0
        %1377 = vmatpush1.xpose.msra.mxu0 0.0
        %1378 = vmatprep.subr.mxu0 0.0
        %1379 = vmatpush1.xpose.msra.mxu0 0.0
        %1380 = vmatprep.subr.mxu0 0.0
        %1381 = vmatpush1.xpose.msra.mxu0 0.0
        %1382 = vmatprep.subr.mxu0 0.0
        %1383 = vmatpush1.xpose.msra.mxu0 0.0
        %1384 = vmatprep.subr.mxu0 0.0
        %1385 = vmatpush1.xpose.msra.mxu0 0.0
        %1386 = vmatprep.subr.mxu0 0.0
        %1387 = vmatpush1.xpose.msra.mxu0 %v1354
        %1388 = vmatprep.subr.mxu0 0.0
        %1389 = vmatpush2.xpose.msra.mxu0 0.0
        %1390 = vmatprep.subr.mxu0 0.0
        %1391 = vmatpush2.xpose.msra.mxu0 0.0
        %1392 = vmatprep.subr.mxu0 0.0
        %1393 = vmatpush2.xpose.msra.mxu0 0.0
        %1394 = vmatprep.subr.mxu0 0.0
        %1395 = vmatpush2.xpose.msra.mxu0 0.0
        %1396 = vmatprep.subr.mxu0 0.0
        %1397 = vmatpush2.xpose.msra.mxu0 0.0
        %1398 = vmatprep.subr.mxu0 0.0
        %1399 = vmatpush2.xpose.msra.mxu0 0.0
        %1400 = vmatprep.subr.mxu0 0.0
        %1401 = vmatpush2.xpose.msra.mxu0 0.0
        %1402 = vmatprep.subr.mxu0 0.0
        %1403 = vmatpush2.xpose.msra.mxu0 0.0
        %1404 = vmatprep.subr.mxu0 0.0
        %1405 = vmatpush2.xpose.msra.mxu0 0.0
        %1406 = vmatprep.subr.mxu0 0.0
        %1407 = vmatpush2.xpose.msra.mxu0 0.0
        %1408 = vmatprep.subr.mxu0 0.0
        %1409 = vmatpush2.xpose.msra.mxu0 0.0
        %1410 = vmatprep.subr.mxu0 0.0
        %1411 = vmatpush2.xpose.msra.mxu0 0.0
        %1412 = vmatprep.subr.mxu0 0.0
        %1413 = vmatpush2.xpose.msra.mxu0 0.0
        %1414 = vmatprep.subr.mxu0 0.0
        %1415 = vmatpush2.xpose.msra.mxu0 0.0
        %1416 = vmatprep.subr.mxu0 0.0
        %1417 = vmatpush2.xpose.msra.mxu0 0.0
        %1418 = vmatprep.subr.mxu0 0.0
        %1419 = vmatpush2.xpose.msra.mxu0 0.0
        %1420 = vmatprep.mubr.f32.mxu0 0.0
        %1421 = vmatmul.mubr.f32.gmra.mxu0 %v1352
        %v1422 = vpop.f32.mrf.mxu0
        %v1423 = vadd.f32 0.0, %v1422
        %v1424 = vpop.f32.mrf.mxu0
        %1425 = vdwg.mxu0
        %v1426 = vsel %vm636, %v1423, -inf
        %1427 = vmax.xlane.f32.xlu0 %v1426
        %v1428 = vpop.xlane.xlu0 %1427
        %v1429 = vsub.f32 %v1423, %v1428
        %v1430 = vmul.f32 %v1429, 1.442695
        %v1431 = vpow.pop %v1430
        %v1432 = vsel %vm636, %v1431, 0.0
        %1433 = vadd.xlane.f32.xlu0 %v1432
        %v1434 = vpop.xlane.xlu0 %1433
        %v1435 = vrcp.pop %v1434
        %1436 = vrot.lane.b32.xlu0 %v624, 104
        %v1437 = vpop.permute.xlu0 %1436
        %v1440 = vsel %vm636, %v1431, 0
        %1442 = vmatprep.subr.mxu0 0.0
        %1443 = vmatpush1.msra.mxu0 0.0
        %1444 = vmatprep.subr.mxu0 0.0
        %1445 = vmatpush1.msra.mxu0 0.0
        %1446 = vmatprep.subr.mxu0 0.0
        %1447 = vmatpush1.msra.mxu0 0.0
        %1448 = vmatprep.subr.mxu0 0.0
        %1449 = vmatpush1.msra.mxu0 0.0
        %1450 = vmatprep.subr.mxu0 0.0
        %1451 = vmatpush1.msra.mxu0 0.0
        %1452 = vmatprep.subr.mxu0 0.0
        %1453 = vmatpush1.msra.mxu0 0.0
        %1454 = vmatprep.subr.mxu0 0.0
        %1455 = vmatpush1.msra.mxu0 0.0
        %1456 = vmatprep.subr.mxu0 0.0
        %1457 = vmatpush1.msra.mxu0 0.0
        %1458 = vmatprep.subr.mxu0 0.0
        %1459 = vmatpush1.msra.mxu0 0.0
        %1460 = vmatprep.subr.mxu0 0.0
        %1461 = vmatpush1.msra.mxu0 0.0
        %1462 = vmatprep.subr.mxu0 0.0
        %1463 = vmatpush1.msra.mxu0 0.0
        %1464 = vmatprep.subr.mxu0 0.0
        %1465 = vmatpush1.msra.mxu0 0.0
        %1466 = vmatprep.subr.mxu0 0.0
        %1467 = vmatpush1.msra.mxu0 0.0
        %1468 = vmatprep.subr.mxu0 0.0
        %1469 = vmatpush1.msra.mxu0 0.0
        %1470 = vmatprep.subr.mxu0 0.0
        %1471 = vmatpush1.msra.mxu0 0.0
        %1472 = vmatprep.subr.mxu0 0.0
        %1473 = vmatpush1.msra.mxu0 %v1437
        %1474 = vmatprep.subr.mxu0 0.0
        %1475 = vmatpush2.msra.mxu0 0.0
        %1476 = vmatprep.subr.mxu0 0.0
        %1477 = vmatpush2.msra.mxu0 0.0
        %1478 = vmatprep.subr.mxu0 0.0
        %1479 = vmatpush2.msra.mxu0 0.0
        %1480 = vmatprep.subr.mxu0 0.0
        %1481 = vmatpush2.msra.mxu0 0.0
        %1482 = vmatprep.subr.mxu0 0.0
        %1483 = vmatpush2.msra.mxu0 0.0
        %1484 = vmatprep.subr.mxu0 0.0
        %1485 = vmatpush2.msra.mxu0 0.0
        %1486 = vmatprep.subr.mxu0 0.0
        %1487 = vmatpush2.msra.mxu0 0.0
        %1488 = vmatprep.subr.mxu0 0.0
        %1489 = vmatpush2.msra.mxu0 0.0
        %1490 = vmatprep.subr.mxu0 0.0
        %1491 = vmatpush2.msra.mxu0 0.0
        %1492 = vmatprep.subr.mxu0 0.0
        %1493 = vmatpush2.msra.mxu0 0.0
        %1494 = vmatprep.subr.mxu0 0.0
        %1495 = vmatpush2.msra.mxu0 0.0
        %1496 = vmatprep.subr.mxu0 0.0
        %1497 = vmatpush2.msra.mxu0 0.0
        %1498 = vmatprep.subr.mxu0 0.0
        %1499 = vmatpush2.msra.mxu0 0.0
        %1500 = vmatprep.subr.mxu0 0.0
        %1501 = vmatpush2.msra.mxu0 0.0
        %1502 = vmatprep.subr.mxu0 0.0
        %1503 = vmatpush2.msra.mxu0 0.0
        %1504 = vmatprep.subr.mxu0 0.0
        %1505 = vmatpush2.msra.mxu0 0.0
        %1506 = vmatprep.mubr.f32.mxu0 0.0
        %1507 = vmatmul.mubr.f32.gmra.mxu0 %v1440
        %v1508 = vpop.f32.mrf.mxu0
        %v1509 = vadd.f32 0.0, %v1508
        %v1510 = vpop.f32.mrf.mxu0
        %1511 = vdwg.mxu0
        %v1512 = vmul.f32 %v1509, %v1435
        %v1514 = vsel %vm636, %v1512, 0
        %1516 = vmatprep.subr.mxu0 0.0
        %1517 = vmatpush1.msra.mxu0 0.0
        %1518 = vmatprep.subr.mxu0 0.0
        %1519 = vmatpush1.msra.mxu0 0.0
        %1520 = vmatprep.subr.mxu0 0.0
        %1521 = vmatpush1.msra.mxu0 0.0
        %1522 = vmatprep.subr.mxu0 0.0
        %1523 = vmatpush1.msra.mxu0 0.0
        %1524 = vmatprep.subr.mxu0 0.0
        %1525 = vmatpush1.msra.mxu0 0.0
        %1526 = vmatprep.subr.mxu0 0.0
        %1527 = vmatpush1.msra.mxu0 0.0
        %1528 = vmatprep.subr.mxu0 0.0
        %1529 = vmatpush1.msra.mxu0 0.0
        %1530 = vmatprep.subr.mxu0 0.0
        %1531 = vmatpush1.msra.mxu0 0.0
        %1532 = vmatprep.subr.mxu0 0.0
        %1533 = vmatpush1.msra.mxu0 0.0
        %1534 = vmatprep.subr.mxu0 0.0
        %1535 = vmatpush1.msra.mxu0 0.0
        %1536 = vmatprep.subr.mxu0 0.0
        %1537 = vmatpush1.msra.mxu0 0.0
        %1538 = vmatprep.subr.mxu0 0.0
        %1539 = vmatpush1.msra.mxu0 0.0
        %1540 = vmatprep.subr.mxu0 0.0
        %1541 = vmatpush1.msra.mxu0 0.0
        %1542 = vmatprep.subr.mxu0 0.0
        %1543 = vmatpush1.msra.mxu0 0.0
        %1544 = vmatprep.subr.mxu0 0.0
        %1545 = vmatpush1.msra.mxu0 0.0
        %1546 = vmatprep.subr.mxu0 0.0
        %1547 = vmatpush1.msra.mxu0 %v635
        %1548 = vmatprep.subr.mxu0 0.0
        %1549 = vmatpush2.msra.mxu0 0.0
        %1550 = vmatprep.subr.mxu0 0.0
        %1551 = vmatpush2.msra.mxu0 0.0
        %1552 = vmatprep.subr.mxu0 0.0
        %1553 = vmatpush2.msra.mxu0 0.0
        %1554 = vmatprep.subr.mxu0 0.0
        %1555 = vmatpush2.msra.mxu0 0.0
        %1556 = vmatprep.subr.mxu0 0.0
        %1557 = vmatpush2.msra.mxu0 0.0
        %1558 = vmatprep.subr.mxu0 0.0
        %1559 = vmatpush2.msra.mxu0 0.0
        %1560 = vmatprep.subr.mxu0 0.0
        %1561 = vmatpush2.msra.mxu0 0.0
        %1562 = vmatprep.subr.mxu0 0.0
        %1563 = vmatpush2.msra.mxu0 0.0
        %1564 = vmatprep.subr.mxu0 0.0
        %1565 = vmatpush2.msra.mxu0 0.0
        %1566 = vmatprep.subr.mxu0 0.0
        %1567 = vmatpush2.msra.mxu0 0.0
        %1568 = vmatprep.subr.mxu0 0.0
        %1569 = vmatpush2.msra.mxu0 0.0
        %1570 = vmatprep.subr.mxu0 0.0
        %1571 = vmatpush2.msra.mxu0 0.0
        %1572 = vmatprep.subr.mxu0 0.0
        %1573 = vmatpush2.msra.mxu0 0.0
        %1574 = vmatprep.subr.mxu0 0.0
        %1575 = vmatpush2.msra.mxu0 0.0
        %1576 = vmatprep.subr.mxu0 0.0
        %1577 = vmatpush2.msra.mxu0 0.0
        %1578 = vmatprep.subr.mxu0 0.0
        %1579 = vmatpush2.msra.mxu0 0.0
        %1580 = vmatprep.mubr.f32.mxu0 0.0
        %1581 = vmatmul.mubr.f32.gmra.mxu0 %v1514
        %v1582 = vpop.f32.mrf.mxu0
        %v1583 = vadd.f32 0.0, %v1582
        %v1584 = vpop.f32.mrf.mxu0
        %1585 = vdwg.mxu0
        %v1586 = vadd.f32 %v1347, %v1583
        %1587 = vst [vmem:[%s348] sm:$0xff] %v1586
        %v1589 = vsel %vm636, %v479, 0
        %v1592 = vsel %vm636, %v554, 0
        %1594 = vmatprep.subr.mxu0 0.0
        %1595 = vmatpush1.xpose.msra.mxu0 0.0
        %1596 = vmatprep.subr.mxu0 0.0
        %1597 = vmatpush1.xpose.msra.mxu0 0.0
        %1598 = vmatprep.subr.mxu0 0.0
        %1599 = vmatpush1.xpose.msra.mxu0 0.0
        %1600 = vmatprep.subr.mxu0 0.0
        %1601 = vmatpush1.xpose.msra.mxu0 0.0
        %1602 = vmatprep.subr.mxu0 0.0
        %1603 = vmatpush1.xpose.msra.mxu0 0.0
        %1604 = vmatprep.subr.mxu0 0.0
        %1605 = vmatpush1.xpose.msra.mxu0 0.0
        %1606 = vmatprep.subr.mxu0 0.0
        %1607 = vmatpush1.xpose.msra.mxu0 0.0
        %1608 = vmatprep.subr.mxu0 0.0
        %1609 = vmatpush1.xpose.msra.mxu0 0.0
        %1610 = vmatprep.subr.mxu0 0.0
        %1611 = vmatpush1.xpose.msra.mxu0 0.0
        %1612 = vmatprep.subr.mxu0 0.0
        %1613 = vmatpush1.xpose.msra.mxu0 0.0
        %1614 = vmatprep.subr.mxu0 0.0
        %1615 = vmatpush1.xpose.msra.mxu0 0.0
        %1616 = vmatprep.subr.mxu0 0.0
        %1617 = vmatpush1.xpose.msra.mxu0 0.0
        %1618 = vmatprep.subr.mxu0 0.0
        %1619 = vmatpush1.xpose.msra.mxu0 0.0
        %1620 = vmatprep.subr.mxu0 0.0
        %1621 = vmatpush1.xpose.msra.mxu0 0.0
        %1622 = vmatprep.subr.mxu0 0.0
        %1623 = vmatpush1.xpose.msra.mxu0 0.0
        %1624 = vmatprep.subr.mxu0 0.0
        %1625 = vmatpush1.xpose.msra.mxu0 %v1592
        %1626 = vmatprep.subr.mxu0 0.0
        %1627 = vmatpush2.xpose.msra.mxu0 0.0
        %1628 = vmatprep.subr.mxu0 0.0
        %1629 = vmatpush2.xpose.msra.mxu0 0.0
        %1630 = vmatprep.subr.mxu0 0.0
        %1631 = vmatpush2.xpose.msra.mxu0 0.0
        %1632 = vmatprep.subr.mxu0 0.0
        %1633 = vmatpush2.xpose.msra.mxu0 0.0
        %1634 = vmatprep.subr.mxu0 0.0
        %1635 = vmatpush2.xpose.msra.mxu0 0.0
        %1636 = vmatprep.subr.mxu0 0.0
        %1637 = vmatpush2.xpose.msra.mxu0 0.0
        %1638 = vmatprep.subr.mxu0 0.0
        %1639 = vmatpush2.xpose.msra.mxu0 0.0
        %1640 = vmatprep.subr.mxu0 0.0
        %1641 = vmatpush2.xpose.msra.mxu0 0.0
        %1642 = vmatprep.subr.mxu0 0.0
        %1643 = vmatpush2.xpose.msra.mxu0 0.0
        %1644 = vmatprep.subr.mxu0 0.0
        %1645 = vmatpush2.xpose.msra.mxu0 0.0
        %1646 = vmatprep.subr.mxu0 0.0
        %1647 = vmatpush2.xpose.msra.mxu0 0.0
        %1648 = vmatprep.subr.mxu0 0.0
        %1649 = vmatpush2.xpose.msra.mxu0 0.0
        %1650 = vmatprep.subr.mxu0 0.0
        %1651 = vmatpush2.xpose.msra.mxu0 0.0
        %1652 = vmatprep.subr.mxu0 0.0
        %1653 = vmatpush2.xpose.msra.mxu0 0.0
        %1654 = vmatprep.subr.mxu0 0.0
        %1655 = vmatpush2.xpose.msra.mxu0 0.0
        %1656 = vmatprep.subr.mxu0 0.0
        %1657 = vmatpush2.xpose.msra.mxu0 0.0
        %1658 = vmatprep.mubr.f32.mxu0 0.0
        %1659 = vmatmul.mubr.f32.gmra.mxu0 %v1589
        %v1660 = vpop.f32.mrf.mxu0
        %v1661 = vadd.f32 0.0, %v1660
        %v1662 = vpop.f32.mrf.mxu0
        %1663 = vdwg.mxu0
        %v1664 = vsel %vm636, %v1661, -inf
        %1665 = vmax.xlane.f32.xlu0 %v1664
        %v1666 = vpop.xlane.xlu0 %1665
        %v1667 = vsub.f32 %v1661, %v1666
        %v1668 = vmul.f32 %v1667, 1.442695
        %v1669 = vpow.pop %v1668
        %v1670 = vsel %vm636, %v1669, 0.0
        %1671 = vadd.xlane.f32.xlu0 %v1670
        %v1672 = vpop.xlane.xlu0 %1671
        %v1673 = vrcp.pop %v1672
        %v1675 = vsel %vm636, %v1669, 0
        %1677 = vmatprep.subr.mxu0 0.0
        %1678 = vmatpush1.msra.mxu0 0.0
        %1679 = vmatprep.subr.mxu0 0.0
        %1680 = vmatpush1.msra.mxu0 0.0
        %1681 = vmatprep.subr.mxu0 0.0
        %1682 = vmatpush1.msra.mxu0 0.0
        %1683 = vmatprep.subr.mxu0 0.0
        %1684 = vmatpush1.msra.mxu0 0.0
        %1685 = vmatprep.subr.mxu0 0.0
        %1686 = vmatpush1.msra.mxu0 0.0
        %1687 = vmatprep.subr.mxu0 0.0
        %1688 = vmatpush1.msra.mxu0 0.0
        %1689 = vmatprep.subr.mxu0 0.0
        %1690 = vmatpush1.msra.mxu0 0.0
        %1691 = vmatprep.subr.mxu0 0.0
        %1692 = vmatpush1.msra.mxu0 0.0
        %1693 = vmatprep.subr.mxu0 0.0
        %1694 = vmatpush1.msra.mxu0 0.0
        %1695 = vmatprep.subr.mxu0 0.0
        %1696 = vmatpush1.msra.mxu0 0.0
        %1697 = vmatprep.subr.mxu0 0.0
        %1698 = vmatpush1.msra.mxu0 0.0
        %1699 = vmatprep.subr.mxu0 0.0
        %1700 = vmatpush1.msra.mxu0 0.0
        %1701 = vmatprep.subr.mxu0 0.0
        %1702 = vmatpush1.msra.mxu0 0.0
        %1703 = vmatprep.subr.mxu0 0.0
        %1704 = vmatpush1.msra.mxu0 0.0
        %1705 = vmatprep.subr.mxu0 0.0
        %1706 = vmatpush1.msra.mxu0 0.0
        %1707 = vmatprep.subr.mxu0 0.0
        %1708 = vmatpush1.msra.mxu0 %v629
        %1709 = vmatprep.subr.mxu0 0.0
        %1710 = vmatpush2.msra.mxu0 0.0
        %1711 = vmatprep.subr.mxu0 0.0
        %1712 = vmatpush2.msra.mxu0 0.0
        %1713 = vmatprep.subr.mxu0 0.0
        %1714 = vmatpush2.msra.mxu0 0.0
        %1715 = vmatprep.subr.mxu0 0.0
        %1716 = vmatpush2.msra.mxu0 0.0
        %1717 = vmatprep.subr.mxu0 0.0
        %1718 = vmatpush2.msra.mxu0 0.0
        %1719 = vmatprep.subr.mxu0 0.0
        %1720 = vmatpush2.msra.mxu0 0.0
        %1721 = vmatprep.subr.mxu0 0.0
        %1722 = vmatpush2.msra.mxu0 0.0
        %1723 = vmatprep.subr.mxu0 0.0
        %1724 = vmatpush2.msra.mxu0 0.0
        %1725 = vmatprep.subr.mxu0 0.0
        %1726 = vmatpush2.msra.mxu0 0.0
        %1727 = vmatprep.subr.mxu0 0.0
        %1728 = vmatpush2.msra.mxu0 0.0
        %1729 = vmatprep.subr.mxu0 0.0
        %1730 = vmatpush2.msra.mxu0 0.0
        %1731 = vmatprep.subr.mxu0 0.0
        %1732 = vmatpush2.msra.mxu0 0.0
        %1733 = vmatprep.subr.mxu0 0.0
        %1734 = vmatpush2.msra.mxu0 0.0
        %1735 = vmatprep.subr.mxu0 0.0
        %1736 = vmatpush2.msra.mxu0 0.0
        %1737 = vmatprep.subr.mxu0 0.0
        %1738 = vmatpush2.msra.mxu0 0.0
        %1739 = vmatprep.subr.mxu0 0.0
        %1740 = vmatpush2.msra.mxu0 0.0
        %1741 = vmatprep.mubr.f32.mxu0 0.0
        %1742 = vmatmul.mubr.f32.gmra.mxu0 %v1675
        %v1743 = vpop.f32.mrf.mxu0
        %v1744 = vadd.f32 0.0, %v1743
        %v1745 = vpop.f32.mrf.mxu0
        %1746 = vdwg.mxu0
        %v1747 = vmul.f32 %v1744, %v1673
        %1748 = vrot.lane.b32.xlu0 %v479, 120
        %v1749 = vpop.permute.xlu0 %1748
        %1750 = vrot.lane.b32.xlu0 %v554, 120
        %v1751 = vpop.permute.xlu0 %1750
        %v1752 = vsel %vm636, %v1749, 0
        %v1754 = vsel %vm636, %v1751, 0
        %1756 = vmatprep.subr.mxu0 0.0
        %1757 = vmatpush1.xpose.msra.mxu0 0.0
        %1758 = vmatprep.subr.mxu0 0.0
        %1759 = vmatpush1.xpose.msra.mxu0 0.0
        %1760 = vmatprep.subr.mxu0 0.0
        %1761 = vmatpush1.xpose.msra.mxu0 0.0
        %1762 = vmatprep.subr.mxu0 0.0
        %1763 = vmatpush1.xpose.msra.mxu0 0.0
        %1764 = vmatprep.subr.mxu0 0.0
        %1765 = vmatpush1.xpose.msra.mxu0 0.0
        %1766 = vmatprep.subr.mxu0 0.0
        %1767 = vmatpush1.xpose.msra.mxu0 0.0
        %1768 = vmatprep.subr.mxu0 0.0
        %1769 = vmatpush1.xpose.msra.mxu0 0.0
        %1770 = vmatprep.subr.mxu0 0.0
        %1771 = vmatpush1.xpose.msra.mxu0 0.0
        %1772 = vmatprep.subr.mxu0 0.0
        %1773 = vmatpush1.xpose.msra.mxu0 0.0
        %1774 = vmatprep.subr.mxu0 0.0
        %1775 = vmatpush1.xpose.msra.mxu0 0.0
        %1776 = vmatprep.subr.mxu0 0.0
        %1777 = vmatpush1.xpose.msra.mxu0 0.0
        %1778 = vmatprep.subr.mxu0 0.0
        %1779 = vmatpush1.xpose.msra.mxu0 0.0
        %1780 = vmatprep.subr.mxu0 0.0
        %1781 = vmatpush1.xpose.msra.mxu0 0.0
        %1782 = vmatprep.subr.mxu0 0.0
        %1783 = vmatpush1.xpose.msra.mxu0 0.0
        %1784 = vmatprep.subr.mxu0 0.0
        %1785 = vmatpush1.xpose.msra.mxu0 0.0
        %1786 = vmatprep.subr.mxu0 0.0
        %1787 = vmatpush1.xpose.msra.mxu0 %v1754
        %1788 = vmatprep.subr.mxu0 0.0
        %1789 = vmatpush2.xpose.msra.mxu0 0.0
        %1790 = vmatprep.subr.mxu0 0.0
        %1791 = vmatpush2.xpose.msra.mxu0 0.0
        %1792 = vmatprep.subr.mxu0 0.0
        %1793 = vmatpush2.xpose.msra.mxu0 0.0
        %1794 = vmatprep.subr.mxu0 0.0
        %1795 = vmatpush2.xpose.msra.mxu0 0.0
        %1796 = vmatprep.subr.mxu0 0.0
        %1797 = vmatpush2.xpose.msra.mxu0 0.0
        %1798 = vmatprep.subr.mxu0 0.0
        %1799 = vmatpush2.xpose.msra.mxu0 0.0
        %1800 = vmatprep.subr.mxu0 0.0
        %1801 = vmatpush2.xpose.msra.mxu0 0.0
        %1802 = vmatprep.subr.mxu0 0.0
        %1803 = vmatpush2.xpose.msra.mxu0 0.0
        %1804 = vmatprep.subr.mxu0 0.0
        %1805 = vmatpush2.xpose.msra.mxu0 0.0
        %1806 = vmatprep.subr.mxu0 0.0
        %1807 = vmatpush2.xpose.msra.mxu0 0.0
        %1808 = vmatprep.subr.mxu0 0.0
        %1809 = vmatpush2.xpose.msra.mxu0 0.0
        %1810 = vmatprep.subr.mxu0 0.0
        %1811 = vmatpush2.xpose.msra.mxu0 0.0
        %1812 = vmatprep.subr.mxu0 0.0
        %1813 = vmatpush2.xpose.msra.mxu0 0.0
        %1814 = vmatprep.subr.mxu0 0.0
        %1815 = vmatpush2.xpose.msra.mxu0 0.0
        %1816 = vmatprep.subr.mxu0 0.0
        %1817 = vmatpush2.xpose.msra.mxu0 0.0
        %1818 = vmatprep.subr.mxu0 0.0
        %1819 = vmatpush2.xpose.msra.mxu0 0.0
        %1820 = vmatprep.mubr.f32.mxu0 0.0
        %1821 = vmatmul.mubr.f32.gmra.mxu0 %v1752
        %v1822 = vpop.f32.mrf.mxu0
        %v1823 = vadd.f32 0.0, %v1822
        %v1824 = vpop.f32.mrf.mxu0
        %1825 = vdwg.mxu0
        %v1826 = vsel %vm636, %v1823, -inf
        %1827 = vmax.xlane.f32.xlu0 %v1826
        %v1828 = vpop.xlane.xlu0 %1827
        %v1829 = vsub.f32 %v1823, %v1828
        %v1830 = vmul.f32 %v1829, 1.442695
        %v1831 = vpow.pop %v1830
        %v1832 = vsel %vm636, %v1831, 0.0
        %1833 = vadd.xlane.f32.xlu0 %v1832
        %v1834 = vpop.xlane.xlu0 %1833
        %v1835 = vrcp.pop %v1834
        %1837 = vrot.lane.b32.xlu0 %v629, 120
        %v1838 = vpop.permute.xlu0 %1837
        %v1841 = vsel %vm636, %v1831, 0
        %1843 = vmatprep.subr.mxu0 0.0
        %1844 = vmatpush1.msra.mxu0 0.0
        %1845 = vmatprep.subr.mxu0 0.0
        %1846 = vmatpush1.msra.mxu0 0.0
        %1847 = vmatprep.subr.mxu0 0.0
        %1848 = vmatpush1.msra.mxu0 0.0
        %1849 = vmatprep.subr.mxu0 0.0
        %1850 = vmatpush1.msra.mxu0 0.0
        %1851 = vmatprep.subr.mxu0 0.0
        %1852 = vmatpush1.msra.mxu0 0.0
        %1853 = vmatprep.subr.mxu0 0.0
        %1854 = vmatpush1.msra.mxu0 0.0
        %1855 = vmatprep.subr.mxu0 0.0
        %1856 = vmatpush1.msra.mxu0 0.0
        %1857 = vmatprep.subr.mxu0 0.0
        %1858 = vmatpush1.msra.mxu0 0.0
        %1859 = vmatprep.subr.mxu0 0.0
        %1860 = vmatpush1.msra.mxu0 0.0
        %1861 = vmatprep.subr.mxu0 0.0
        %1862 = vmatpush1.msra.mxu0 0.0
        %1863 = vmatprep.subr.mxu0 0.0
        %1864 = vmatpush1.msra.mxu0 0.0
        %1865 = vmatprep.subr.mxu0 0.0
        %1866 = vmatpush1.msra.mxu0 0.0
        %1867 = vmatprep.subr.mxu0 0.0
        %1868 = vmatpush1.msra.mxu0 0.0
        %1869 = vmatprep.subr.mxu0 0.0
        %1870 = vmatpush1.msra.mxu0 0.0
        %1871 = vmatprep.subr.mxu0 0.0
        %1872 = vmatpush1.msra.mxu0 0.0
        %1873 = vmatprep.subr.mxu0 0.0
        %1874 = vmatpush1.msra.mxu0 %v1838
        %1875 = vmatprep.subr.mxu0 0.0
        %1876 = vmatpush2.msra.mxu0 0.0
        %1877 = vmatprep.subr.mxu0 0.0
        %1878 = vmatpush2.msra.mxu0 0.0
        %1879 = vmatprep.subr.mxu0 0.0
        %1880 = vmatpush2.msra.mxu0 0.0
        %1881 = vmatprep.subr.mxu0 0.0
        %1882 = vmatpush2.msra.mxu0 0.0
        %1883 = vmatprep.subr.mxu0 0.0
        %1884 = vmatpush2.msra.mxu0 0.0
        %1885 = vmatprep.subr.mxu0 0.0
        %1886 = vmatpush2.msra.mxu0 0.0
        %1887 = vmatprep.subr.mxu0 0.0
        %1888 = vmatpush2.msra.mxu0 0.0
        %1889 = vmatprep.subr.mxu0 0.0
        %1890 = vmatpush2.msra.mxu0 0.0
        %1891 = vmatprep.subr.mxu0 0.0
        %1892 = vmatpush2.msra.mxu0 0.0
        %1893 = vmatprep.subr.mxu0 0.0
        %1894 = vmatpush2.msra.mxu0 0.0
        %1895 = vmatprep.subr.mxu0 0.0
        %1896 = vmatpush2.msra.mxu0 0.0
        %1897 = vmatprep.subr.mxu0 0.0
        %1898 = vmatpush2.msra.mxu0 0.0
        %1899 = vmatprep.subr.mxu0 0.0
        %1900 = vmatpush2.msra.mxu0 0.0
        %1901 = vmatprep.subr.mxu0 0.0
        %1902 = vmatpush2.msra.mxu0 0.0
        %1903 = vmatprep.subr.mxu0 0.0
        %1904 = vmatpush2.msra.mxu0 0.0
        %1905 = vmatprep.subr.mxu0 0.0
        %1906 = vmatpush2.msra.mxu0 0.0
        %1907 = vmatprep.mubr.f32.mxu0 0.0
        %1908 = vmatmul.mubr.f32.gmra.mxu0 %v1841
        %v1909 = vpop.f32.mrf.mxu0
        %v1910 = vadd.f32 0.0, %v1909
        %v1911 = vpop.f32.mrf.mxu0
        %1912 = vdwg.mxu0
        %v1913 = vmul.f32 %v1910, %v1835
        %v1915 = vsel %vm636, %v1913, 0
        %1917 = vmatprep.subr.mxu0 0.0
        %1918 = vmatpush1.msra.mxu0 0.0
        %1919 = vmatprep.subr.mxu0 0.0
        %1920 = vmatpush1.msra.mxu0 0.0
        %1921 = vmatprep.subr.mxu0 0.0
        %1922 = vmatpush1.msra.mxu0 0.0
        %1923 = vmatprep.subr.mxu0 0.0
        %1924 = vmatpush1.msra.mxu0 0.0
        %1925 = vmatprep.subr.mxu0 0.0
        %1926 = vmatpush1.msra.mxu0 0.0
        %1927 = vmatprep.subr.mxu0 0.0
        %1928 = vmatpush1.msra.mxu0 0.0
        %1929 = vmatprep.subr.mxu0 0.0
        %1930 = vmatpush1.msra.mxu0 0.0
        %1931 = vmatprep.subr.mxu0 0.0
        %1932 = vmatpush1.msra.mxu0 0.0
        %1933 = vmatprep.subr.mxu0 0.0
        %1934 = vmatpush1.msra.mxu0 0.0
        %1935 = vmatprep.subr.mxu0 0.0
        %1936 = vmatpush1.msra.mxu0 0.0
        %1937 = vmatprep.subr.mxu0 0.0
        %1938 = vmatpush1.msra.mxu0 0.0
        %1939 = vmatprep.subr.mxu0 0.0
        %1940 = vmatpush1.msra.mxu0 0.0
        %1941 = vmatprep.subr.mxu0 0.0
        %1942 = vmatpush1.msra.mxu0 0.0
        %1943 = vmatprep.subr.mxu0 0.0
        %1944 = vmatpush1.msra.mxu0 0.0
        %1945 = vmatprep.subr.mxu0 0.0
        %1946 = vmatpush1.msra.mxu0 0.0
        %1947 = vmatprep.subr.mxu0 0.0
        %1948 = vmatpush1.msra.mxu0 %v633
        %1949 = vmatprep.subr.mxu0 0.0
        %1950 = vmatpush2.msra.mxu0 0.0
        %1951 = vmatprep.subr.mxu0 0.0
        %1952 = vmatpush2.msra.mxu0 0.0
        %1953 = vmatprep.subr.mxu0 0.0
        %1954 = vmatpush2.msra.mxu0 0.0
        %1955 = vmatprep.subr.mxu0 0.0
        %1956 = vmatpush2.msra.mxu0 0.0
        %1957 = vmatprep.subr.mxu0 0.0
        %1958 = vmatpush2.msra.mxu0 0.0
        %1959 = vmatprep.subr.mxu0 0.0
        %1960 = vmatpush2.msra.mxu0 0.0
        %1961 = vmatprep.subr.mxu0 0.0
        %1962 = vmatpush2.msra.mxu0 0.0
        %1963 = vmatprep.subr.mxu0 0.0
        %1964 = vmatpush2.msra.mxu0 0.0
        %1965 = vmatprep.subr.mxu0 0.0
        %1966 = vmatpush2.msra.mxu0 0.0
        %1967 = vmatprep.subr.mxu0 0.0
        %1968 = vmatpush2.msra.mxu0 0.0
        %1969 = vmatprep.subr.mxu0 0.0
        %1970 = vmatpush2.msra.mxu0 0.0
        %1971 = vmatprep.subr.mxu0 0.0
        %1972 = vmatpush2.msra.mxu0 0.0
        %1973 = vmatprep.subr.mxu0 0.0
        %1974 = vmatpush2.msra.mxu0 0.0
        %1975 = vmatprep.subr.mxu0 0.0
        %1976 = vmatpush2.msra.mxu0 0.0
        %1977 = vmatprep.subr.mxu0 0.0
        %1978 = vmatpush2.msra.mxu0 0.0
        %1979 = vmatprep.subr.mxu0 0.0
        %1980 = vmatpush2.msra.mxu0 0.0
        %1981 = vmatprep.mubr.f32.mxu0 0.0
        %1982 = vmatmul.mubr.f32.gmra.mxu0 %v1915
        %v1983 = vpop.f32.mrf.mxu0
        %v1984 = vadd.f32 0.0, %v1983
        %v1985 = vpop.f32.mrf.mxu0
        %1986 = vdwg.mxu0
        %v1988 = vsel %vm636, %v1747, 0
        %1990 = vmatprep.subr.mxu0 0.0
        %1991 = vmatpush1.msra.mxu0 0.0
        %1992 = vmatprep.subr.mxu0 0.0
        %1993 = vmatpush1.msra.mxu0 0.0
        %1994 = vmatprep.subr.mxu0 0.0
        %1995 = vmatpush1.msra.mxu0 0.0
        %1996 = vmatprep.subr.mxu0 0.0
        %1997 = vmatpush1.msra.mxu0 0.0
        %1998 = vmatprep.subr.mxu0 0.0
        %1999 = vmatpush1.msra.mxu0 0.0
        %2000 = vmatprep.subr.mxu0 0.0
        %2001 = vmatpush1.msra.mxu0 0.0
        %2002 = vmatprep.subr.mxu0 0.0
        %2003 = vmatpush1.msra.mxu0 0.0
        %2004 = vmatprep.subr.mxu0 0.0
        %2005 = vmatpush1.msra.mxu0 0.0
        %2006 = vmatprep.subr.mxu0 0.0
        %2007 = vmatpush1.msra.mxu0 0.0
        %2008 = vmatprep.subr.mxu0 0.0
        %2009 = vmatpush1.msra.mxu0 0.0
        %2010 = vmatprep.subr.mxu0 0.0
        %2011 = vmatpush1.msra.mxu0 0.0
        %2012 = vmatprep.subr.mxu0 0.0
        %2013 = vmatpush1.msra.mxu0 0.0
        %2014 = vmatprep.subr.mxu0 0.0
        %2015 = vmatpush1.msra.mxu0 0.0
        %2016 = vmatprep.subr.mxu0 0.0
        %2017 = vmatpush1.msra.mxu0 0.0
        %2018 = vmatprep.subr.mxu0 0.0
        %2019 = vmatpush1.msra.mxu0 0.0
        %2020 = vmatprep.subr.mxu0 0.0
        %2021 = vmatpush1.msra.mxu0 %v632
        %2022 = vmatprep.subr.mxu0 0.0
        %2023 = vmatpush2.msra.mxu0 0.0
        %2024 = vmatprep.subr.mxu0 0.0
        %2025 = vmatpush2.msra.mxu0 0.0
        %2026 = vmatprep.subr.mxu0 0.0
        %2027 = vmatpush2.msra.mxu0 0.0
        %2028 = vmatprep.subr.mxu0 0.0
        %2029 = vmatpush2.msra.mxu0 0.0
        %2030 = vmatprep.subr.mxu0 0.0
        %2031 = vmatpush2.msra.mxu0 0.0
        %2032 = vmatprep.subr.mxu0 0.0
        %2033 = vmatpush2.msra.mxu0 0.0
        %2034 = vmatprep.subr.mxu0 0.0
        %2035 = vmatpush2.msra.mxu0 0.0
        %2036 = vmatprep.subr.mxu0 0.0
        %2037 = vmatpush2.msra.mxu0 0.0
        %2038 = vmatprep.subr.mxu0 0.0
        %2039 = vmatpush2.msra.mxu0 0.0
        %2040 = vmatprep.subr.mxu0 0.0
        %2041 = vmatpush2.msra.mxu0 0.0
        %2042 = vmatprep.subr.mxu0 0.0
        %2043 = vmatpush2.msra.mxu0 0.0
        %2044 = vmatprep.subr.mxu0 0.0
        %2045 = vmatpush2.msra.mxu0 0.0
        %2046 = vmatprep.subr.mxu0 0.0
        %2047 = vmatpush2.msra.mxu0 0.0
        %2048 = vmatprep.subr.mxu0 0.0
        %2049 = vmatpush2.msra.mxu0 0.0
        %2050 = vmatprep.subr.mxu0 0.0
        %2051 = vmatpush2.msra.mxu0 0.0
        %2052 = vmatprep.subr.mxu0 0.0
        %2053 = vmatpush2.msra.mxu0 0.0
        %2054 = vmatprep.mubr.f32.mxu0 0.0
        %2055 = vmatmul.mubr.f32.gmra.mxu0 %v1988
        %v2056 = vpop.f32.mrf.mxu0
        %v2057 = vadd.f32 %v1984, %v2056
        %v2058 = vpop.f32.mrf.mxu0
        %2059 = vdwg.mxu0
        %2060 = vrot.lane.b32.xlu0 %v479, 112
        %v2061 = vpop.permute.xlu0 %2060
        %2062 = vrot.lane.b32.xlu0 %v554, 112
        %v2063 = vpop.permute.xlu0 %2062
        %v2064 = vsel %vm636, %v2061, 0
        %v2066 = vsel %vm636, %v2063, 0
        %2068 = vmatprep.subr.mxu0 0.0
        %2069 = vmatpush1.xpose.msra.mxu0 0.0
        %2070 = vmatprep.subr.mxu0 0.0
        %2071 = vmatpush1.xpose.msra.mxu0 0.0
        %2072 = vmatprep.subr.mxu0 0.0
        %2073 = vmatpush1.xpose.msra.mxu0 0.0
        %2074 = vmatprep.subr.mxu0 0.0
        %2075 = vmatpush1.xpose.msra.mxu0 0.0
        %2076 = vmatprep.subr.mxu0 0.0
        %2077 = vmatpush1.xpose.msra.mxu0 0.0
        %2078 = vmatprep.subr.mxu0 0.0
        %2079 = vmatpush1.xpose.msra.mxu0 0.0
        %2080 = vmatprep.subr.mxu0 0.0
        %2081 = vmatpush1.xpose.msra.mxu0 0.0
        %2082 = vmatprep.subr.mxu0 0.0
        %2083 = vmatpush1.xpose.msra.mxu0 0.0
        %2084 = vmatprep.subr.mxu0 0.0
        %2085 = vmatpush1.xpose.msra.mxu0 0.0
        %2086 = vmatprep.subr.mxu0 0.0
        %2087 = vmatpush1.xpose.msra.mxu0 0.0
        %2088 = vmatprep.subr.mxu0 0.0
        %2089 = vmatpush1.xpose.msra.mxu0 0.0
        %2090 = vmatprep.subr.mxu0 0.0
        %2091 = vmatpush1.xpose.msra.mxu0 0.0
        %2092 = vmatprep.subr.mxu0 0.0
        %2093 = vmatpush1.xpose.msra.mxu0 0.0
        %2094 = vmatprep.subr.mxu0 0.0
        %2095 = vmatpush1.xpose.msra.mxu0 0.0
        %2096 = vmatprep.subr.mxu0 0.0
        %2097 = vmatpush1.xpose.msra.mxu0 0.0
        %2098 = vmatprep.subr.mxu0 0.0
        %2099 = vmatpush1.xpose.msra.mxu0 %v2066
        %2100 = vmatprep.subr.mxu0 0.0
        %2101 = vmatpush2.xpose.msra.mxu0 0.0
        %2102 = vmatprep.subr.mxu0 0.0
        %2103 = vmatpush2.xpose.msra.mxu0 0.0
        %2104 = vmatprep.subr.mxu0 0.0
        %2105 = vmatpush2.xpose.msra.mxu0 0.0
        %2106 = vmatprep.subr.mxu0 0.0
        %2107 = vmatpush2.xpose.msra.mxu0 0.0
        %2108 = vmatprep.subr.mxu0 0.0
        %2109 = vmatpush2.xpose.msra.mxu0 0.0
        %2110 = vmatprep.subr.mxu0 0.0
        %2111 = vmatpush2.xpose.msra.mxu0 0.0
        %2112 = vmatprep.subr.mxu0 0.0
        %2113 = vmatpush2.xpose.msra.mxu0 0.0
        %2114 = vmatprep.subr.mxu0 0.0
        %2115 = vmatpush2.xpose.msra.mxu0 0.0
        %2116 = vmatprep.subr.mxu0 0.0
        %2117 = vmatpush2.xpose.msra.mxu0 0.0
        %2118 = vmatprep.subr.mxu0 0.0
        %2119 = vmatpush2.xpose.msra.mxu0 0.0
        %2120 = vmatprep.subr.mxu0 0.0
        %2121 = vmatpush2.xpose.msra.mxu0 0.0
        %2122 = vmatprep.subr.mxu0 0.0
        %2123 = vmatpush2.xpose.msra.mxu0 0.0
        %2124 = vmatprep.subr.mxu0 0.0
        %2125 = vmatpush2.xpose.msra.mxu0 0.0
        %2126 = vmatprep.subr.mxu0 0.0
        %2127 = vmatpush2.xpose.msra.mxu0 0.0
        %2128 = vmatprep.subr.mxu0 0.0
        %2129 = vmatpush2.xpose.msra.mxu0 0.0
        %2130 = vmatprep.subr.mxu0 0.0
        %2131 = vmatpush2.xpose.msra.mxu0 0.0
        %2132 = vmatprep.mubr.f32.mxu0 0.0
        %2133 = vmatmul.mubr.f32.gmra.mxu0 %v2064
        %v2134 = vpop.f32.mrf.mxu0
        %v2135 = vadd.f32 0.0, %v2134
        %v2136 = vpop.f32.mrf.mxu0
        %2137 = vdwg.mxu0
        %v2138 = vsel %vm636, %v2135, -inf
        %2139 = vmax.xlane.f32.xlu0 %v2138
        %v2140 = vpop.xlane.xlu0 %2139
        %v2141 = vsub.f32 %v2135, %v2140
        %v2142 = vmul.f32 %v2141, 1.442695
        %v2143 = vpow.pop %v2142
        %v2144 = vsel %vm636, %v2143, 0.0
        %2145 = vadd.xlane.f32.xlu0 %v2144
        %v2146 = vpop.xlane.xlu0 %2145
        %v2147 = vrcp.pop %v2146
        %2148 = vrot.lane.b32.xlu0 %v629, 112
        %v2149 = vpop.permute.xlu0 %2148
        %v2152 = vsel %vm636, %v2143, 0
        %2154 = vmatprep.subr.mxu0 0.0
        %2155 = vmatpush1.msra.mxu0 0.0
        %2156 = vmatprep.subr.mxu0 0.0
        %2157 = vmatpush1.msra.mxu0 0.0
        %2158 = vmatprep.subr.mxu0 0.0
        %2159 = vmatpush1.msra.mxu0 0.0
        %2160 = vmatprep.subr.mxu0 0.0
        %2161 = vmatpush1.msra.mxu0 0.0
        %2162 = vmatprep.subr.mxu0 0.0
        %2163 = vmatpush1.msra.mxu0 0.0
        %2164 = vmatprep.subr.mxu0 0.0
        %2165 = vmatpush1.msra.mxu0 0.0
        %2166 = vmatprep.subr.mxu0 0.0
        %2167 = vmatpush1.msra.mxu0 0.0
        %2168 = vmatprep.subr.mxu0 0.0
        %2169 = vmatpush1.msra.mxu0 0.0
        %2170 = vmatprep.subr.mxu0 0.0
        %2171 = vmatpush1.msra.mxu0 0.0
        %2172 = vmatprep.subr.mxu0 0.0
        %2173 = vmatpush1.msra.mxu0 0.0
        %2174 = vmatprep.subr.mxu0 0.0
        %2175 = vmatpush1.msra.mxu0 0.0
        %2176 = vmatprep.subr.mxu0 0.0
        %2177 = vmatpush1.msra.mxu0 0.0
        %2178 = vmatprep.subr.mxu0 0.0
        %2179 = vmatpush1.msra.mxu0 0.0
        %2180 = vmatprep.subr.mxu0 0.0
        %2181 = vmatpush1.msra.mxu0 0.0
        %2182 = vmatprep.subr.mxu0 0.0
        %2183 = vmatpush1.msra.mxu0 0.0
        %2184 = vmatprep.subr.mxu0 0.0
        %2185 = vmatpush1.msra.mxu0 %v2149
        %2186 = vmatprep.subr.mxu0 0.0
        %2187 = vmatpush2.msra.mxu0 0.0
        %2188 = vmatprep.subr.mxu0 0.0
        %2189 = vmatpush2.msra.mxu0 0.0
        %2190 = vmatprep.subr.mxu0 0.0
        %2191 = vmatpush2.msra.mxu0 0.0
        %2192 = vmatprep.subr.mxu0 0.0
        %2193 = vmatpush2.msra.mxu0 0.0
        %2194 = vmatprep.subr.mxu0 0.0
        %2195 = vmatpush2.msra.mxu0 0.0
        %2196 = vmatprep.subr.mxu0 0.0
        %2197 = vmatpush2.msra.mxu0 0.0
        %2198 = vmatprep.subr.mxu0 0.0
        %2199 = vmatpush2.msra.mxu0 0.0
        %2200 = vmatprep.subr.mxu0 0.0
        %2201 = vmatpush2.msra.mxu0 0.0
        %2202 = vmatprep.subr.mxu0 0.0
        %2203 = vmatpush2.msra.mxu0 0.0
        %2204 = vmatprep.subr.mxu0 0.0
        %2205 = vmatpush2.msra.mxu0 0.0
        %2206 = vmatprep.subr.mxu0 0.0
        %2207 = vmatpush2.msra.mxu0 0.0
        %2208 = vmatprep.subr.mxu0 0.0
        %2209 = vmatpush2.msra.mxu0 0.0
        %2210 = vmatprep.subr.mxu0 0.0
        %2211 = vmatpush2.msra.mxu0 0.0
        %2212 = vmatprep.subr.mxu0 0.0
        %2213 = vmatpush2.msra.mxu0 0.0
        %2214 = vmatprep.subr.mxu0 0.0
        %2215 = vmatpush2.msra.mxu0 0.0
        %2216 = vmatprep.subr.mxu0 0.0
        %2217 = vmatpush2.msra.mxu0 0.0
        %2218 = vmatprep.mubr.f32.mxu0 0.0
        %2219 = vmatmul.mubr.f32.gmra.mxu0 %v2152
        %v2220 = vpop.f32.mrf.mxu0
        %v2221 = vadd.f32 0.0, %v2220
        %v2222 = vpop.f32.mrf.mxu0
        %2223 = vdwg.mxu0
        %v2224 = vmul.f32 %v2221, %v2147
        %v2226 = vsel %vm636, %v2224, 0
        %2228 = vmatprep.subr.mxu0 0.0
        %2229 = vmatpush1.msra.mxu0 0.0
        %2230 = vmatprep.subr.mxu0 0.0
        %2231 = vmatpush1.msra.mxu0 0.0
        %2232 = vmatprep.subr.mxu0 0.0
        %2233 = vmatpush1.msra.mxu0 0.0
        %2234 = vmatprep.subr.mxu0 0.0
        %2235 = vmatpush1.msra.mxu0 0.0
        %2236 = vmatprep.subr.mxu0 0.0
        %2237 = vmatpush1.msra.mxu0 0.0
        %2238 = vmatprep.subr.mxu0 0.0
        %2239 = vmatpush1.msra.mxu0 0.0
        %2240 = vmatprep.subr.mxu0 0.0
        %2241 = vmatpush1.msra.mxu0 0.0
        %2242 = vmatprep.subr.mxu0 0.0
        %2243 = vmatpush1.msra.mxu0 0.0
        %2244 = vmatprep.subr.mxu0 0.0
        %2245 = vmatpush1.msra.mxu0 0.0
        %2246 = vmatprep.subr.mxu0 0.0
        %2247 = vmatpush1.msra.mxu0 0.0
        %2248 = vmatprep.subr.mxu0 0.0
        %2249 = vmatpush1.msra.mxu0 0.0
        %2250 = vmatprep.subr.mxu0 0.0
        %2251 = vmatpush1.msra.mxu0 0.0
        %2252 = vmatprep.subr.mxu0 0.0
        %2253 = vmatpush1.msra.mxu0 0.0
        %2254 = vmatprep.subr.mxu0 0.0
        %2255 = vmatpush1.msra.mxu0 0.0
        %2256 = vmatprep.subr.mxu0 0.0
        %2257 = vmatpush1.msra.mxu0 0.0
        %2258 = vmatprep.subr.mxu0 0.0
        %2259 = vmatpush1.msra.mxu0 %v634
        %2260 = vmatprep.subr.mxu0 0.0
        %2261 = vmatpush2.msra.mxu0 0.0
        %2262 = vmatprep.subr.mxu0 0.0
        %2263 = vmatpush2.msra.mxu0 0.0
        %2264 = vmatprep.subr.mxu0 0.0
        %2265 = vmatpush2.msra.mxu0 0.0
        %2266 = vmatprep.subr.mxu0 0.0
        %2267 = vmatpush2.msra.mxu0 0.0
        %2268 = vmatprep.subr.mxu0 0.0
        %2269 = vmatpush2.msra.mxu0 0.0
        %2270 = vmatprep.subr.mxu0 0.0
        %2271 = vmatpush2.msra.mxu0 0.0
        %2272 = vmatprep.subr.mxu0 0.0
        %2273 = vmatpush2.msra.mxu0 0.0
        %2274 = vmatprep.subr.mxu0 0.0
        %2275 = vmatpush2.msra.mxu0 0.0
        %2276 = vmatprep.subr.mxu0 0.0
        %2277 = vmatpush2.msra.mxu0 0.0
        %2278 = vmatprep.subr.mxu0 0.0
        %2279 = vmatpush2.msra.mxu0 0.0
        %2280 = vmatprep.subr.mxu0 0.0
        %2281 = vmatpush2.msra.mxu0 0.0
        %2282 = vmatprep.subr.mxu0 0.0
        %2283 = vmatpush2.msra.mxu0 0.0
        %2284 = vmatprep.subr.mxu0 0.0
        %2285 = vmatpush2.msra.mxu0 0.0
        %2286 = vmatprep.subr.mxu0 0.0
        %2287 = vmatpush2.msra.mxu0 0.0
        %2288 = vmatprep.subr.mxu0 0.0
        %2289 = vmatpush2.msra.mxu0 0.0
        %2290 = vmatprep.subr.mxu0 0.0
        %2291 = vmatpush2.msra.mxu0 0.0
        %2292 = vmatprep.mubr.f32.mxu0 0.0
        %2293 = vmatmul.mubr.f32.gmra.mxu0 %v2226
        %v2294 = vpop.f32.mrf.mxu0
        %v2295 = vadd.f32 0.0, %v2294
        %v2296 = vpop.f32.mrf.mxu0
        %2297 = vdwg.mxu0
        %v2298 = vadd.f32 %v2057, %v2295
        %2299 = vrot.lane.b32.xlu0 %v479, 104
        %v2300 = vpop.permute.xlu0 %2299
        %2301 = vrot.lane.b32.xlu0 %v554, 104
        %v2302 = vpop.permute.xlu0 %2301
        %v2303 = vsel %vm636, %v2300, 0
        %v2305 = vsel %vm636, %v2302, 0
        %2307 = vmatprep.subr.mxu0 0.0
        %2308 = vmatpush1.xpose.msra.mxu0 0.0
        %2309 = vmatprep.subr.mxu0 0.0
        %2310 = vmatpush1.xpose.msra.mxu0 0.0
        %2311 = vmatprep.subr.mxu0 0.0
        %2312 = vmatpush1.xpose.msra.mxu0 0.0
        %2313 = vmatprep.subr.mxu0 0.0
        %2314 = vmatpush1.xpose.msra.mxu0 0.0
        %2315 = vmatprep.subr.mxu0 0.0
        %2316 = vmatpush1.xpose.msra.mxu0 0.0
        %2317 = vmatprep.subr.mxu0 0.0
        %2318 = vmatpush1.xpose.msra.mxu0 0.0
        %2319 = vmatprep.subr.mxu0 0.0
        %2320 = vmatpush1.xpose.msra.mxu0 0.0
        %2321 = vmatprep.subr.mxu0 0.0
        %2322 = vmatpush1.xpose.msra.mxu0 0.0
        %2323 = vmatprep.subr.mxu0 0.0
        %2324 = vmatpush1.xpose.msra.mxu0 0.0
        %2325 = vmatprep.subr.mxu0 0.0
        %2326 = vmatpush1.xpose.msra.mxu0 0.0
        %2327 = vmatprep.subr.mxu0 0.0
        %2328 = vmatpush1.xpose.msra.mxu0 0.0
        %2329 = vmatprep.subr.mxu0 0.0
        %2330 = vmatpush1.xpose.msra.mxu0 0.0
        %2331 = vmatprep.subr.mxu0 0.0
        %2332 = vmatpush1.xpose.msra.mxu0 0.0
        %2333 = vmatprep.subr.mxu0 0.0
        %2334 = vmatpush1.xpose.msra.mxu0 0.0
        %2335 = vmatprep.subr.mxu0 0.0
        %2336 = vmatpush1.xpose.msra.mxu0 0.0
        %2337 = vmatprep.subr.mxu0 0.0
        %2338 = vmatpush1.xpose.msra.mxu0 %v2305
        %2339 = vmatprep.subr.mxu0 0.0
        %2340 = vmatpush2.xpose.msra.mxu0 0.0
        %2341 = vmatprep.subr.mxu0 0.0
        %2342 = vmatpush2.xpose.msra.mxu0 0.0
        %2343 = vmatprep.subr.mxu0 0.0
        %2344 = vmatpush2.xpose.msra.mxu0 0.0
        %2345 = vmatprep.subr.mxu0 0.0
        %2346 = vmatpush2.xpose.msra.mxu0 0.0
        %2347 = vmatprep.subr.mxu0 0.0
        %2348 = vmatpush2.xpose.msra.mxu0 0.0
        %2349 = vmatprep.subr.mxu0 0.0
        %2350 = vmatpush2.xpose.msra.mxu0 0.0
        %2351 = vmatprep.subr.mxu0 0.0
        %2352 = vmatpush2.xpose.msra.mxu0 0.0
        %2353 = vmatprep.subr.mxu0 0.0
        %2354 = vmatpush2.xpose.msra.mxu0 0.0
        %2355 = vmatprep.subr.mxu0 0.0
        %2356 = vmatpush2.xpose.msra.mxu0 0.0
        %2357 = vmatprep.subr.mxu0 0.0
        %2358 = vmatpush2.xpose.msra.mxu0 0.0
        %2359 = vmatprep.subr.mxu0 0.0
        %2360 = vmatpush2.xpose.msra.mxu0 0.0
        %2361 = vmatprep.subr.mxu0 0.0
        %2362 = vmatpush2.xpose.msra.mxu0 0.0
        %2363 = vmatprep.subr.mxu0 0.0
        %2364 = vmatpush2.xpose.msra.mxu0 0.0
        %2365 = vmatprep.subr.mxu0 0.0
        %2366 = vmatpush2.xpose.msra.mxu0 0.0
        %2367 = vmatprep.subr.mxu0 0.0
        %2368 = vmatpush2.xpose.msra.mxu0 0.0
        %2369 = vmatprep.subr.mxu0 0.0
        %2370 = vmatpush2.xpose.msra.mxu0 0.0
        %2371 = vmatprep.mubr.f32.mxu0 0.0
        %2372 = vmatmul.mubr.f32.gmra.mxu0 %v2303
        %v2373 = vpop.f32.mrf.mxu0
        %v2374 = vadd.f32 0.0, %v2373
        %v2375 = vpop.f32.mrf.mxu0
        %2376 = vdwg.mxu0
        %v2377 = vsel %vm636, %v2374, -inf
        %2378 = vmax.xlane.f32.xlu0 %v2377
        %v2379 = vpop.xlane.xlu0 %2378
        %v2380 = vsub.f32 %v2374, %v2379
        %v2381 = vmul.f32 %v2380, 1.442695
        %v2382 = vpow.pop %v2381
        %v2383 = vsel %vm636, %v2382, 0.0
        %2384 = vadd.xlane.f32.xlu0 %v2383
        %v2385 = vpop.xlane.xlu0 %2384
        %v2386 = vrcp.pop %v2385
        %2387 = vrot.lane.b32.xlu0 %v629, 104
        %v2388 = vpop.permute.xlu0 %2387
        %v2391 = vsel %vm636, %v2382, 0
        %2393 = vmatprep.subr.mxu0 0.0
        %2394 = vmatpush1.msra.mxu0 0.0
        %2395 = vmatprep.subr.mxu0 0.0
        %2396 = vmatpush1.msra.mxu0 0.0
        %2397 = vmatprep.subr.mxu0 0.0
        %2398 = vmatpush1.msra.mxu0 0.0
        %2399 = vmatprep.subr.mxu0 0.0
        %2400 = vmatpush1.msra.mxu0 0.0
        %2401 = vmatprep.subr.mxu0 0.0
        %2402 = vmatpush1.msra.mxu0 0.0
        %2403 = vmatprep.subr.mxu0 0.0
        %2404 = vmatpush1.msra.mxu0 0.0
        %2405 = vmatprep.subr.mxu0 0.0
        %2406 = vmatpush1.msra.mxu0 0.0
        %2407 = vmatprep.subr.mxu0 0.0
        %2408 = vmatpush1.msra.mxu0 0.0
        %2409 = vmatprep.subr.mxu0 0.0
        %2410 = vmatpush1.msra.mxu0 0.0
        %2411 = vmatprep.subr.mxu0 0.0
        %2412 = vmatpush1.msra.mxu0 0.0
        %2413 = vmatprep.subr.mxu0 0.0
        %2414 = vmatpush1.msra.mxu0 0.0
        %2415 = vmatprep.subr.mxu0 0.0
        %2416 = vmatpush1.msra.mxu0 0.0
        %2417 = vmatprep.subr.mxu0 0.0
        %2418 = vmatpush1.msra.mxu0 0.0
        %2419 = vmatprep.subr.mxu0 0.0
        %2420 = vmatpush1.msra.mxu0 0.0
        %2421 = vmatprep.subr.mxu0 0.0
        %2422 = vmatpush1.msra.mxu0 0.0
        %2423 = vmatprep.subr.mxu0 0.0
        %2424 = vmatpush1.msra.mxu0 %v2388
        %2425 = vmatprep.subr.mxu0 0.0
        %2426 = vmatpush2.msra.mxu0 0.0
        %2427 = vmatprep.subr.mxu0 0.0
        %2428 = vmatpush2.msra.mxu0 0.0
        %2429 = vmatprep.subr.mxu0 0.0
        %2430 = vmatpush2.msra.mxu0 0.0
        %2431 = vmatprep.subr.mxu0 0.0
        %2432 = vmatpush2.msra.mxu0 0.0
        %2433 = vmatprep.subr.mxu0 0.0
        %2434 = vmatpush2.msra.mxu0 0.0
        %2435 = vmatprep.subr.mxu0 0.0
        %2436 = vmatpush2.msra.mxu0 0.0
        %2437 = vmatprep.subr.mxu0 0.0
        %2438 = vmatpush2.msra.mxu0 0.0
        %2439 = vmatprep.subr.mxu0 0.0
        %2440 = vmatpush2.msra.mxu0 0.0
        %2441 = vmatprep.subr.mxu0 0.0
        %2442 = vmatpush2.msra.mxu0 0.0
        %2443 = vmatprep.subr.mxu0 0.0
        %2444 = vmatpush2.msra.mxu0 0.0
        %2445 = vmatprep.subr.mxu0 0.0
        %2446 = vmatpush2.msra.mxu0 0.0
        %2447 = vmatprep.subr.mxu0 0.0
        %2448 = vmatpush2.msra.mxu0 0.0
        %2449 = vmatprep.subr.mxu0 0.0
        %2450 = vmatpush2.msra.mxu0 0.0
        %2451 = vmatprep.subr.mxu0 0.0
        %2452 = vmatpush2.msra.mxu0 0.0
        %2453 = vmatprep.subr.mxu0 0.0
        %2454 = vmatpush2.msra.mxu0 0.0
        %2455 = vmatprep.subr.mxu0 0.0
        %2456 = vmatpush2.msra.mxu0 0.0
        %2457 = vmatprep.mubr.f32.mxu0 0.0
        %2458 = vmatmul.mubr.f32.gmra.mxu0 %v2391
        %v2459 = vpop.f32.mrf.mxu0
        %v2460 = vadd.f32 0.0, %v2459
        %v2461 = vpop.f32.mrf.mxu0
        %2462 = vdwg.mxu0
        %v2463 = vmul.f32 %v2460, %v2386
        %v2465 = vsel %vm636, %v2463, 0
        %2467 = vmatprep.subr.mxu0 0.0
        %2468 = vmatpush1.msra.mxu0 0.0
        %2469 = vmatprep.subr.mxu0 0.0
        %2470 = vmatpush1.msra.mxu0 0.0
        %2471 = vmatprep.subr.mxu0 0.0
        %2472 = vmatpush1.msra.mxu0 0.0
        %2473 = vmatprep.subr.mxu0 0.0
        %2474 = vmatpush1.msra.mxu0 0.0
        %2475 = vmatprep.subr.mxu0 0.0
        %2476 = vmatpush1.msra.mxu0 0.0
        %2477 = vmatprep.subr.mxu0 0.0
        %2478 = vmatpush1.msra.mxu0 0.0
        %2479 = vmatprep.subr.mxu0 0.0
        %2480 = vmatpush1.msra.mxu0 0.0
        %2481 = vmatprep.subr.mxu0 0.0
        %2482 = vmatpush1.msra.mxu0 0.0
        %2483 = vmatprep.subr.mxu0 0.0
        %2484 = vmatpush1.msra.mxu0 0.0
        %2485 = vmatprep.subr.mxu0 0.0
        %2486 = vmatpush1.msra.mxu0 0.0
        %2487 = vmatprep.subr.mxu0 0.0
        %2488 = vmatpush1.msra.mxu0 0.0
        %2489 = vmatprep.subr.mxu0 0.0
        %2490 = vmatpush1.msra.mxu0 0.0
        %2491 = vmatprep.subr.mxu0 0.0
        %2492 = vmatpush1.msra.mxu0 0.0
        %2493 = vmatprep.subr.mxu0 0.0
        %2494 = vmatpush1.msra.mxu0 0.0
        %2495 = vmatprep.subr.mxu0 0.0
        %2496 = vmatpush1.msra.mxu0 0.0
        %2497 = vmatprep.subr.mxu0 0.0
        %2498 = vmatpush1.msra.mxu0 %v635
        %2499 = vmatprep.subr.mxu0 0.0
        %2500 = vmatpush2.msra.mxu0 0.0
        %2501 = vmatprep.subr.mxu0 0.0
        %2502 = vmatpush2.msra.mxu0 0.0
        %2503 = vmatprep.subr.mxu0 0.0
        %2504 = vmatpush2.msra.mxu0 0.0
        %2505 = vmatprep.subr.mxu0 0.0
        %2506 = vmatpush2.msra.mxu0 0.0
        %2507 = vmatprep.subr.mxu0 0.0
        %2508 = vmatpush2.msra.mxu0 0.0
        %2509 = vmatprep.subr.mxu0 0.0
        %2510 = vmatpush2.msra.mxu0 0.0
        %2511 = vmatprep.subr.mxu0 0.0
        %2512 = vmatpush2.msra.mxu0 0.0
        %2513 = vmatprep.subr.mxu0 0.0
        %2514 = vmatpush2.msra.mxu0 0.0
        %2515 = vmatprep.subr.mxu0 0.0
        %2516 = vmatpush2.msra.mxu0 0.0
        %2517 = vmatprep.subr.mxu0 0.0
        %2518 = vmatpush2.msra.mxu0 0.0
        %2519 = vmatprep.subr.mxu0 0.0
        %2520 = vmatpush2.msra.mxu0 0.0
        %2521 = vmatprep.subr.mxu0 0.0
        %2522 = vmatpush2.msra.mxu0 0.0
        %2523 = vmatprep.subr.mxu0 0.0
        %2524 = vmatpush2.msra.mxu0 0.0
        %2525 = vmatprep.subr.mxu0 0.0
        %2526 = vmatpush2.msra.mxu0 0.0
        %2527 = vmatprep.subr.mxu0 0.0
        %2528 = vmatpush2.msra.mxu0 0.0
        %2529 = vmatprep.subr.mxu0 0.0
        %2530 = vmatpush2.msra.mxu0 0.0
        %2531 = vmatprep.mubr.f32.mxu0 0.0
        %2532 = vmatmul.mubr.f32.gmra.mxu0 %v2465
        %v2533 = vpop.f32.mrf.mxu0
        %v2534 = vadd.f32 0.0, %v2533
        %v2535 = vpop.f32.mrf.mxu0
        %2536 = vdwg.mxu0
        %v2537 = vadd.f32 %v2298, %v2534
        %s2538 = scalar_lea.vmem %s348, 8 [#allocation11]
        %2539 = vst [vmem:[%s2538] sm:$0xff] %v2537
        %s2540 = sand.u32 %s154, 1
        %s2541 = scalar_lea.sflag [#allocation4], %s2540
        %s2542 = sand.u32 %s154, 1
        %s2543 = smul.addr %s2542, 16
        %s2544 = scalar_lea.vmem [#allocation11], %s2543
        // Predicated region
        $region61: #{tpu_custom_call.1} parent=39 // pred_check
          %p2545 = pneg %p164
        $region62: #{tpu_custom_call.1} parent=39 // pred_check_branch
          %2547 = sbr.rel (%p2545) target = $region64
        $region63: #{tpu_custom_call.1} parent=39 // pred_region
          %s2548 = smul.u32 2, %s26
          %s2550 = ssub.s32 256, 256
          %2551 = vsyncadd %s2541, %s2550
          %s2552 = smul.addr %s2548, 128
          %s2553 = scalar_lea.hbm %s5, %s2552
          %s2554 = sshll.u32 %s2544, 4
          %s2555 = int_to_ptr.vmem [resolvable:$true] %s2554
          %2560 = dma.vmem_to_hbm [thread:$0]  %s2555, 256, %s2553, %s2541, 128, 128, 8
        $region64: #{tpu_custom_call.1} parent=39 // pred_fallthru
          _
      $region40: #{tpu_custom_call.1} parent=5 // pred_fallthru
        _
      %p2561 = scmp.le.s32.totalorder 2, %s21
      // Predicated region
      $region65: #{tpu_custom_call.1} parent=5 // pred_check
        %p2562 = pneg %p2561
      $region66: #{tpu_custom_call.1} parent=5 // pred_check_branch
        %2564 = sbr.rel (%p2562) target = $region68
      $region67: #{tpu_custom_call.1} parent=5 // pred_region
        %s2565 = ssub.s32 %s21, 2
        // Predicated region
        $region69: #{tpu_custom_call.1} parent=67 // pred_check
          %p2566 = pneg %p170
        $region70: #{tpu_custom_call.1} parent=67 // pred_check_branch
          %2568 = sbr.rel (%p2566) target = $region72
        $region71: #{tpu_custom_call.1} parent=67 // pred_region
          %s2569 = sand.u32 %s155, 1
          %s2570 = scalar_lea.sflag [#allocation4], %s2569
          %s2571 = sand.u32 %s155, 1
          %s2572 = smul.addr %s2571, 16
          %s2573 = scalar_lea.vmem [#allocation11], %s2572
          %2574 = dma.done %s2570, 256
        $region72: #{tpu_custom_call.1} parent=67 // pred_fallthru
          _
      $region68: #{tpu_custom_call.1} parent=5 // pred_fallthru
        _
    $region6: #{tpu_custom_call.1} parent=1 // loop_footer
      %s25 = sadd.s32 1, %s21
    $region7: #{tpu_custom_call.1} parent=1 // loop_footer_branch
      %20 = sbr.rel target = $region3
    $region8: #{tpu_custom_call.1} parent=1 // loop_exit
      _
    %2575 = vsyncpa [#allocation3], 1
    %s2576 = scalar_lea.sflag [#allocation3], 1
    %2577 = vsyncpa %s2576, 1
    %2578 = vsyncpa [#allocation6], 1
    %s2579 = scalar_lea.sflag [#allocation6], 1
    %2580 = vsyncpa %s2579, 1
    %2581 = vsyncpa [#allocation9], 1
    %2582 = vsyncpa [#allocation4], 1
    %s2583 = scalar_lea.sflag [#allocation4], 1
    %2584 = vsyncpa %s2583, 1

</llo_original>
